<compile_context>
chip_gen: v6e
topology: v6e:2x2x1
jax: 0.10.0
libtpu: 0.0.40
codegen_flags: <defaults>
</compile_context>

<pallas_src>
import jax
import jax.numpy as jnp
from jax.experimental import pallas as pl
from jax.experimental.pallas import tpu as pltpu

EPS = 1e-3  # BatchNorm2d(eps=0.001)


def conv1x1_bn_kernel(x_ref, w_ref, gb_ref, o_ref):
    # x_ref:  (C_in, M)   resident across grid steps (constant index_map)
    # w_ref:  (tn, C_in)  this step's output-channel tile of the conv weight
    # gb_ref: (tn, 2)     column 0 = gamma, column 1 = beta
    # o_ref:  (tn, M)     float32 output tile
    y = jnp.dot(w_ref[...], x_ref[...], preferred_element_type=jnp.float32)  # (tn, M)
    inv_m = 1.0 / y.shape[1]
    # Centered two-pass batch statistics over the (N, H, W) axis (= lane axis):
    # avoids the E[y^2]-mean^2 cancellation when |mean| >> std.
    mean = jnp.sum(y, axis=1, keepdims=True) * inv_m            # (tn, 1)
    centered = y - mean
    var = jnp.sum(centered * centered, axis=1, keepdims=True) * inv_m  # biased var
    inv_std = jax.lax.rsqrt(var + EPS)
    gamma = gb_ref[:, 0:1]
    beta = gb_ref[:, 1:2]
    o_ref[...] = (centered * (inv_std * gamma) + beta).astype(o_ref.dtype)


def conv1x1_bn(x_nchw, weight_oi, gamma, beta, *, tn=112,
               operand_dtype=jnp.float32):
    """Fused Conv2d(1x1, bias=False) + BatchNorm2d (training mode, affine).

    x_nchw:    (N, C_in, H, W) float32
    weight_oi: (C_out, C_in)   float32 (PyTorch 1x1 conv weight, k-dims squeezed)
    gamma, beta: (C_out,)      float32
    operand_dtype: dtype used for the x / weight DMAs & MXU operands.
        jnp.float32  -> bit-faithful to the PyTorch module (default).
        jnp.bfloat16 -> ~2x less x/weight HBM traffic; accumulation stays f32,
                        but expect ~1e-3..1e-2 deviation from the f32 module.
    """
    N, C_in, H, W = x_nchw.shape
    C_out = weight_oi.shape[0]
    M = N * H * W

    # NCHW-native flattening: pure reshape (no copy) for N == 1.
    if N == 1:
        x_mat = x_nchw.reshape(C_in, M)
    else:
        # TODO(synk): N>1 materializes a real NCHW<->C-major transpose in XLA
        # outside the kernel; the module only uses N == 1.
        x_mat = jnp.moveaxis(x_nchw, 0, 1).reshape(C_in, M)

    x_mat = x_mat.astype(operand_dtype)
    w_mat = weight_oi.astype(operand_dtype)
    gb = jnp.stack(
        [gamma.astype(jnp.float32), beta.astype(jnp.float32)], axis=1)  # (C_out, 2)

    # Scalability guard: x is held fully VMEM-resident and BN stats reduce over
    # the whole M axis inside one grid step.  That is fine at 14x14 (~1 MB) but
    # does not scale past ~28x28 on v7x's 64 MiB VMEM.
    # TODO(synk): for larger H*W add an "arbitrary" M grid axis with
    # sum / sum-of-squares scratch accumulators and finalize BN on the last step.
    x_bytes = C_in * M * x_mat.dtype.itemsize
    assert x_bytes <= 24 * 1024 * 1024, (
        "x-resident 1x1conv+BN kernel needs an M-tiled two-pass restructure "
        "for this spatial size")

    if C_out % tn != 0 or tn % 8 != 0:
        tn = C_out  # fallback: single output tile
    grid = (C_out // tn,)

    cost = pl.CostEstimate(
        flops=2 * C_out * C_in * M,
        transcendentals=C_out,  # one rsqrt per output channel
        bytes_accessed=(C_in * M) * x_mat.dtype.itemsize
        + (C_out * C_in) * w_mat.dtype.itemsize
        + C_out * 2 * 4
        + C_out * M * 4,
    )

    out_mat = pl.pallas_call(
        conv1x1_bn_kernel,
        out_shape=jax.ShapeDtypeStruct((C_out, M), jnp.float32),
        grid=grid,
        in_specs=[
            pl.BlockSpec((C_in, M), lambda j: (0, 0)),    # x: resident, DMA'd once
            pl.BlockSpec((tn, C_in), lambda j: (j, 0)),   # weight tile (PyTorch layout)
            pl.BlockSpec((tn, 2), lambda j: (j, 0)),      # merged [gamma | beta] tile
        ],
        out_specs=pl.BlockSpec((tn, M), lambda j: (j, 0)),
        compiler_params=pltpu.CompilerParams(
            dimension_semantics=("parallel",),
        ),
        cost_estimate=cost,
    )(x_mat, w_mat, gb)

    # (C_out, M) -> (N, C_out, H, W): pure reshape for N == 1.
    if N == 1:
        return out_mat.reshape(1, C_out, H, W)
    return jnp.moveaxis(out_mat.reshape(C_out, N, H, W), 0, 1)


# TODO(synk): BatchNorm2d running_mean/running_var buffer updates
# (momentum=0.01, unbiased var) are a training side effect and are not
# produced here; only the forward output is computed.


if __name__ == "__main__":
    key = jax.random.PRNGKey(0)
    k_x, k_w, k_g, k_b = jax.random.split(key, 4)

    N, C_in, H, W = 1, 1344, 14, 14   # shapes implied by the module
    C_out = 224

    x = jax.random.normal(k_x, (N, C_in, H, W), dtype=jnp.float32)
    # Conv2d(1344, 224, k=1, bias=False) weight with 1x1 kernel dims squeezed.
    weight = jax.random.normal(k_w, (C_out, C_in), dtype=jnp.float32) * 0.02
    # BatchNorm2d(224) affine params.
    gamma = 1.0 + 0.01 * jax.random.normal(k_g, (C_out,), dtype=jnp.float32)
    beta = 0.01 * jax.random.normal(k_b, (C_out,), dtype=jnp.float32)

    # Default path: f32 operands, faithful to the PyTorch module.
    out = conv1x1_bn(x, weight, gamma, beta)
    # Optional byte-saving path from the perf review: bf16 operands, f32 accum.
    out_bf16 = conv1x1_bn(x, weight, gamma, beta, operand_dtype=jnp.bfloat16)
    jax.block_until_ready((out, out_bf16))

    # Plain-JAX f32 reference (same math as the PyTorch module in train mode).
    x_mat = x.reshape(C_in, H * W)
    y_ref = weight @ x_mat                                  # (C_out, M)
    mean = y_ref.mean(axis=1, keepdims=True)
    var = y_ref.var(axis=1, keepdims=True)                  # biased, like BN
    ref = (y_ref - mean) / jnp.sqrt(var + EPS) * gamma[:, None] + beta[:, None]
    ref = ref.reshape(1, C_out, H, W)

    assert jnp.allclose(out, ref, atol=1e-3, rtol=1e-3)
    # bf16-operand fast path does not meet 1e-3 vs the f32 module (as the
    # review warned); validate it at its documented looser tolerance.
    assert jnp.allclose(out_bf16, ref, atol=2e-2, rtol=2e-2)

    print("KERNEL_OK")
</pallas_src>

<mosaic_0001>
module attributes {stable_mosaic.version = 11 : i64} {
  func.func @conv1x1_bn_kernel(%arg0: i32, %arg1: memref<1344x196xf32, #tpu.memory_space<vmem>>, %arg2: memref<112x1344xf32, #tpu.memory_space<vmem>>, %arg3: memref<112x2xf32, #tpu.memory_space<vmem>>, %arg4: memref<112x196xf32, #tpu.memory_space<vmem>>) attributes {dimension_semantics = [#tpu.dimension_semantics<parallel>], iteration_bounds = array<i64: 2>, scalar_prefetch = 0 : i64, scratch_operands = 0 : i64, tpu.core_type = #tpu.core_type<tc>, window_params = [{pipeline_mode = #tpu.pipeline_mode<synchronous>, transform_indices = @transform_0, window_bounds = array<i64: 1344, 196>}, {transform_indices = @transform_1, window_bounds = array<i64: 112, 1344>}, {transform_indices = @transform_2, window_bounds = array<i64: 112, 2>}, {transform_indices = @transform_3, window_bounds = array<i64: 112, 196>}]} {
    %c0 = arith.constant 0 : index
    %c0_0 = arith.constant 0 : index
    %0 = vector.load %arg2[%c0, %c0_0] : memref<112x1344xf32, #tpu.memory_space<vmem>>, vector<112x1344xf32>
    %c0_1 = arith.constant 0 : index
    %c0_2 = arith.constant 0 : index
    %1 = vector.load %arg1[%c0_1, %c0_2] : memref<1344x196xf32, #tpu.memory_space<vmem>>, vector<1344x196xf32>
    %cst = arith.constant dense<0.000000e+00> : vector<112x196xf32>
    %2 = tpu.matmul %0, %1, %cst {dimension_numbers = #tpu.dot_dimension_numbers<[1], [0], [0], [1], [0, 0, 1, 1], [], []>} : vector<112x1344xf32>, vector<1344x196xf32>, vector<112x196xf32> -> vector<112x196xf32>
    %cst_3 = arith.constant dense<0.000000e+00> : vector<112xf32>
    %3 = vector.multi_reduction <add>, %2, %cst_3 [1] : vector<112x196xf32> to vector<112xf32>
    %4 = vector.shape_cast %3 : vector<112xf32> to vector<112x1xf32>
    %cst_4 = arith.constant 0.00510204071 : f32
    %5 = vector.broadcast %cst_4 : f32 to vector<112x1xf32>
    %6 = arith.mulf %4, %5 : vector<112x1xf32>
    %7 = vector.broadcast %6 : vector<112x1xf32> to vector<112x196xf32>
    %8 = arith.subf %2, %7 : vector<112x196xf32>
    %9 = arith.mulf %8, %8 : vector<112x196xf32>
    %cst_5 = arith.constant dense<0.000000e+00> : vector<112xf32>
    %10 = vector.multi_reduction <add>, %9, %cst_5 [1] : vector<112x196xf32> to vector<112xf32>
    %11 = vector.shape_cast %10 : vector<112xf32> to vector<112x1xf32>
    %cst_6 = arith.constant 0.00510204071 : f32
    %12 = vector.broadcast %cst_6 : f32 to vector<112x1xf32>
    %13 = arith.mulf %11, %12 : vector<112x1xf32>
    %cst_7 = arith.constant 1.000000e-03 : f32
    %14 = vector.broadcast %cst_7 : f32 to vector<112x1xf32>
    %15 = arith.addf %13, %14 : vector<112x1xf32>
    %16 = math.rsqrt %15 : vector<112x1xf32>
    %c0_8 = arith.constant 0 : index
    %c0_9 = arith.constant 0 : index
    %17 = vector.load %arg3[%c0_8, %c0_9] : memref<112x2xf32, #tpu.memory_space<vmem>>, vector<112x1xf32>
    %c0_10 = arith.constant 0 : index
    %c1 = arith.constant 1 : index
    %18 = vector.load %arg3[%c0_10, %c1] : memref<112x2xf32, #tpu.memory_space<vmem>>, vector<112x1xf32>
    %19 = arith.mulf %16, %17 : vector<112x1xf32>
    %20 = vector.broadcast %19 : vector<112x1xf32> to vector<112x196xf32>
    %21 = arith.mulf %8, %20 : vector<112x196xf32>
    %22 = vector.broadcast %18 : vector<112x1xf32> to vector<112x196xf32>
    %23 = arith.addf %21, %22 : vector<112x196xf32>
    %c0_11 = arith.constant 0 : index
    %c0_12 = arith.constant 0 : index
    %24 = vector.load %arg4[%c0_11, %c0_12] : memref<112x196xf32, #tpu.memory_space<vmem>>, vector<112x196xf32>
    tpu.vector_store %arg4[%c0_11, %c0_12], %23 {strides = array<i32>} : memref<112x196xf32, #tpu.memory_space<vmem>>, vector<112x196xf32>,
    return
  }
  func.func @transform_0(%arg0: i32) -> (i32, i32) {
    %c0_i32 = arith.constant 0 : i32
    %c0_i32_0 = arith.constant 0 : i32
    %c0_i32_1 = arith.constant 0 : i32
    return %c0_i32, %c0_i32_0 : i32, i32
  }
  func.func @transform_1(%arg0: i32) -> (i32, i32) {
    %c0_i32 = arith.constant 0 : i32
    %c0_i32_0 = arith.constant 0 : i32
    return %arg0, %c0_i32 : i32, i32
  }
  func.func @transform_2(%arg0: i32) -> (i32, i32) {
    %c0_i32 = arith.constant 0 : i32
    %c0_i32_0 = arith.constant 0 : i32
    return %arg0, %c0_i32 : i32, i32
  }
  func.func @transform_3(%arg0: i32) -> (i32, i32) {
    %c0_i32 = arith.constant 0 : i32
    %c0_i32_0 = arith.constant 0 : i32
    return %arg0, %c0_i32 : i32, i32
  }
}

</mosaic_0001>

<llo_original>
// kernel: tpu_custom_call.1
$region0: #{tpu_custom_call.1}
  #allocation0 [shape = 'u32[]', space=smem, size = 0x4, offset = 0x4, fixed_abs, tag = 'smem constant byte address 0x4 - core index']
  #allocation1 [shape = 'u32[144,128]{1,0:T(1,128)}', space=vmem, size = 0x12000, scoped, tag = 'internal scratch']
  %s0 = inlined_call_operand.vmem [shape: f32[1344,196], index: 0, kind: input, shape index: {}]
  %s1 = inlined_call_operand.vmem [shape: f32[224,1344], index: 1, kind: input, shape index: {}]
  %s2 = inlined_call_operand.vmem [shape: f32[224,2], index: 2, kind: input, shape index: {}]
  %s3 = inlined_call_operand.vmem [shape: f32[224,196], index: 3, kind: output, shape index: {}]
  %s4 = sld [smem:[#allocation0]]
  $region45: #{tpu_custom_call.1} parent=0
    _
  %s6 = ssub.s32 1, %s4
  %s7 = scalar_select 0, %s6, %s4
  loop: start=0, step=1, limit=4
  $region2: #{tpu_custom_call.1} parent=0 // loop_pre_header
    _
  $region3: #{tpu_custom_call.1} parent=0 // loop_header
    %s9 = sphi 0, %s13
    %p10 = scmp.ge.s32.totalorder %s9, 4
    %s17 = sphi 0, %s17
    %s19 = sphi 0, %s17
    %s20 = sphi 0, %s19
    %s34 = sphi 0, %s20
    %s40 = sphi 0, %s42
    %s43 = sphi 0, %s40
    %s44 = sphi 0, %s43
    %s60 = sphi 0, %s44
    %s66 = sphi 0, %s68
    %s69 = sphi 0, %s66
    %s70 = sphi 0, %s69
    %s86 = sphi 0, %s70
    %s92 = sphi 0, %s94
    %s95 = sphi 0, %s92
    %s96 = sphi 0, %s95
    %s112 = sphi 0, %s96
  $region4: #{tpu_custom_call.1} parent=0 // loop_header_branch
    %12 = sbr.rel (%p10) target = $region8
  $region5: #{tpu_custom_call.1} parent=0 // loop_body
    %s14 = ssub.s32 %s9, 1
    %s15 = ssub.s32 %s9, 2
    %s16 = sadd.s32 %s9, 1
    %s18 = sadd.s32 %s17, 1
    %p21 = scmp.eq.s32.totalorder %s9, 1
    %p22 = scmp.ne.s32.totalorder %s17, %s19
    %p23 = scmp.eq.s32.totalorder %s9, 0
    %p24 = por %p22, %p23
    %p25 = scmp.ne.s32.totalorder %s17, %s19
    %p26 = scmp.eq.s32.totalorder %s14, 1
    %p27 = por %p25, %p26
    %p28 = scmp.ne.s32.totalorder %s19, %s20
    %p29 = scmp.eq.s32.totalorder %s14, 0
    %p30 = por %p28, %p29
    %p31 = scmp.ne.s32.totalorder %s19, %s20
    %p32 = scmp.eq.s32.totalorder %s15, 1
    %p33 = por %p31, %p32
    %p35 = scmp.ne.s32.totalorder %s20, %s34
    %p36 = scmp.eq.s32.totalorder %s15, 0
    %p37 = por %p35, %p36
    %s38 = ssub.s32 %s9, %s16
    %p39 = scmp.eq.s32.totalorder %s38, 0
    %s41 = sadd.s32 %s40, 1
    %s42 = scalar_select %p39, %s40, %s41
    %p45 = pneg %p39
    %p46 = scmp.eq.s32.totalorder %s9, 1
    %p47 = por %p45, %p46
    %p48 = scmp.ne.s32.totalorder %s40, %s43
    %p49 = scmp.eq.s32.totalorder %s9, 0
    %p50 = por %p48, %p49
    %p51 = scmp.ne.s32.totalorder %s40, %s43
    %p52 = scmp.eq.s32.totalorder %s14, 1
    %p53 = por %p51, %p52
    %p54 = scmp.ne.s32.totalorder %s43, %s44
    %p55 = scmp.eq.s32.totalorder %s14, 0
    %p56 = por %p54, %p55
    %p57 = scmp.ne.s32.totalorder %s43, %s44
    %p58 = scmp.eq.s32.totalorder %s15, 1
    %p59 = por %p57, %p58
    %p61 = scmp.ne.s32.totalorder %s44, %s60
    %p62 = scmp.eq.s32.totalorder %s15, 0
    %p63 = por %p61, %p62
    %s64 = ssub.s32 %s9, %s16
    %p65 = scmp.eq.s32.totalorder %s64, 0
    %s67 = sadd.s32 %s66, 1
    %s68 = scalar_select %p65, %s66, %s67
    %p71 = pneg %p65
    %p72 = scmp.eq.s32.totalorder %s9, 1
    %p73 = por %p71, %p72
    %p74 = scmp.ne.s32.totalorder %s66, %s69
    %p75 = scmp.eq.s32.totalorder %s9, 0
    %p76 = por %p74, %p75
    %p77 = scmp.ne.s32.totalorder %s66, %s69
    %p78 = scmp.eq.s32.totalorder %s14, 1
    %p79 = por %p77, %p78
    %p80 = scmp.ne.s32.totalorder %s69, %s70
    %p81 = scmp.eq.s32.totalorder %s14, 0
    %p82 = por %p80, %p81
    %p83 = scmp.ne.s32.totalorder %s69, %s70
    %p84 = scmp.eq.s32.totalorder %s15, 1
    %p85 = por %p83, %p84
    %p87 = scmp.ne.s32.totalorder %s70, %s86
    %p88 = scmp.eq.s32.totalorder %s15, 0
    %p89 = por %p87, %p88
    %s90 = ssub.s32 %s9, %s16
    %p91 = scmp.eq.s32.totalorder %s90, 0
    %s93 = sadd.s32 %s92, 1
    %s94 = scalar_select %p91, %s92, %s93
    %p97 = pneg %p91
    %p98 = scmp.eq.s32.totalorder %s9, 1
    %p99 = por %p97, %p98
    %p100 = scmp.ne.s32.totalorder %s92, %s95
    %p101 = scmp.eq.s32.totalorder %s9, 0
    %p102 = por %p100, %p101
    %p103 = scmp.ne.s32.totalorder %s92, %s95
    %p104 = scmp.eq.s32.totalorder %s14, 1
    %p105 = por %p103, %p104
    %p106 = scmp.ne.s32.totalorder %s95, %s96
    %p107 = scmp.eq.s32.totalorder %s14, 0
    %p108 = por %p106, %p107
    %p109 = scmp.ne.s32.totalorder %s95, %s96
    %p110 = scmp.eq.s32.totalorder %s15, 1
    %p111 = por %p109, %p110
    %p113 = scmp.ne.s32.totalorder %s96, %s112
    %p114 = scmp.eq.s32.totalorder %s15, 0
    %p115 = por %p113, %p114
    %p116 = scmp.le.s32.totalorder 1, %s9
    %p117 = scmp.lt.s32.totalorder %s9, 3
    %p118 = pnand %p116, %p117
    %p119 = pneg %p118
    // Predicated region
    $region9: #{tpu_custom_call.1} parent=5 // pred_check
      _
    $region10: #{tpu_custom_call.1} parent=5 // pred_check_branch
      %121 = sbr.rel (%p118) target = $region12
    $region11: #{tpu_custom_call.1} parent=5 // pred_region
      %s122 = ssub.s32 %s9, 1
      // Predicated region
      $region13: #{tpu_custom_call.1} parent=11 // pred_check
        %p123 = pneg %p30
      $region14: #{tpu_custom_call.1} parent=11 // pred_check_branch
        %125 = sbr.rel (%p123) target = $region16
      $region15: #{tpu_custom_call.1} parent=11 // pred_region
        _
      $region16: #{tpu_custom_call.1} parent=11 // pred_fallthru
        _
    $region12: #{tpu_custom_call.1} parent=5 // pred_fallthru
      _
    %p126 = scmp.lt.s32.totalorder %s9, 2
    // Predicated region
    $region17: #{tpu_custom_call.1} parent=5 // pred_check
      %p127 = pneg %p126
    $region18: #{tpu_custom_call.1} parent=5 // pred_check_branch
      %129 = sbr.rel (%p127) target = $region20
    $region19: #{tpu_custom_call.1} parent=5 // pred_region
      // Predicated region
      $region21: #{tpu_custom_call.1} parent=19 // pred_check
        %p130 = pneg %p50
      $region22: #{tpu_custom_call.1} parent=19 // pred_check_branch
        %132 = sbr.rel (%p130) target = $region24
      $region23: #{tpu_custom_call.1} parent=19 // pred_region
        %s133 = smul.u32 14, %s9
        %p134 = scmp.lt.s32.totalorder %s133, 27
        %s135 = scalar_select %p134, %s133, 27
        %s136 = smul.addr %s135, 11
        %s137 = smul.addr %s136, 8
        %s138 = scalar_lea.vmem %s1, %s137
        %s139 = smul.u32 14, %s9
      $region24: #{tpu_custom_call.1} parent=19 // pred_fallthru
        _
      // Predicated region
      $region25: #{tpu_custom_call.1} parent=19 // pred_check
        %p140 = pneg %p76
      $region26: #{tpu_custom_call.1} parent=19 // pred_check_branch
        %142 = sbr.rel (%p140) target = $region28
      $region27: #{tpu_custom_call.1} parent=19 // pred_region
        %s143 = smul.u32 14, %s9
        %p144 = scmp.lt.s32.totalorder %s143, 27
        %s145 = scalar_select %p144, %s143, 27
        %s146 = smul.addr %s145, 8
        %s147 = scalar_lea.vmem %s2, %s146
        %s148 = smul.u32 14, %s9
      $region28: #{tpu_custom_call.1} parent=19 // pred_fallthru
        _
    $region20: #{tpu_custom_call.1} parent=5 // pred_fallthru
      _
    %p149 = scmp.le.s32.totalorder 1, %s9
    %p150 = scmp.lt.s32.totalorder %s9, 3
    %p151 = pnand %p149, %p150
    %p152 = pneg %p151
    // Predicated region
    $region29: #{tpu_custom_call.1} parent=5 // pred_check
      _
    $region30: #{tpu_custom_call.1} parent=5 // pred_check_branch
      %154 = sbr.rel (%p151) target = $region32
    $region31: #{tpu_custom_call.1} parent=5 // pred_region
      %s155 = ssub.s32 %s9, 1
      %p156 = pneg %p30
      %p157 = pneg %p27
      %s158 = smul.u32 14, %s14
      %p159 = scmp.lt.s32.totalorder %s158, 27
      %s160 = scalar_select %p159, %s158, 27
      %s161 = smul.addr %s160, 11
      %s162 = smul.addr %s161, 8
      %s163 = scalar_lea.vmem %s1, %s162
      %p164 = pneg %p56
      %p165 = pneg %p53
      %s166 = smul.u32 14, %s14
      %p167 = scmp.lt.s32.totalorder %s166, 27
      %s168 = scalar_select %p167, %s166, 27
      %s169 = smul.addr %s168, 8
      %s170 = scalar_lea.vmem %s2, %s169
      %p171 = pneg %p82
      %p172 = pneg %p79
      %p173 = pneg %p108
      %p174 = pneg %p105
      %s175 = smul.u32 14, %s14
      %p176 = scmp.lt.s32.totalorder %s175, 27
      %s177 = scalar_select %p176, %s175, 27
      %s178 = smul.addr %s177, 2
      %s179 = smul.addr %s178, 8
      %s180 = scalar_lea.vmem %s3, %s179
      %s181 = smul.u32 14, %s14
      %p182 = scmp.lt.s32.totalorder %s181, 27
      %s183 = scalar_select %p182, %s181, 27
      %s184 = smul.addr %s183, 11
      %s185 = smul.addr %s184, 8
      %s186 = scalar_lea.vmem %s1, %s185
      %s187 = smul.u32 14, %s14
      %s188 = smul.u32 14, %s14
      %p189 = scmp.lt.s32.totalorder %s188, 27
      %s190 = scalar_select %p189, %s188, 27
      %s191 = smul.addr %s190, 8
      %s192 = scalar_lea.vmem %s2, %s191
      %s193 = smul.u32 14, %s14
      %s194 = smul.u32 14, %s14
      %p195 = scmp.lt.s32.totalorder %s194, 27
      %s196 = scalar_select %p195, %s194, 27
      %s197 = smul.addr %s196, 2
      %s198 = smul.addr %s197, 8
      %s199 = scalar_lea.vmem %s3, %s198
      %s200 = smul.u32 14, %s14
      %v201 = vld [vmem:[%s186] sm:$0xff]
      %v202 = vld [vmem:[%s186 + $0x8] sm:$0xff]
      %v203 = vld [vmem:[%s186 + $0x10] sm:$0xff]
      %v204 = vld [vmem:[%s186 + $0x18] sm:$0xff]
      %v205 = vld [vmem:[%s186 + $0x20] sm:$0xff]
      %v206 = vld [vmem:[%s186 + $0x28] sm:$0xff]
      %v207 = vld [vmem:[%s186 + $0x30] sm:$0xff]
      %v208 = vld [vmem:[%s186 + $0x38] sm:$0xff]
      %v209 = vld [vmem:[%s186 + $0x40] sm:$0xff]
      %v210 = vld [vmem:[%s186 + $0x48] sm:$0xff]
      %v211 = vld [vmem:[%s186 + $0x50] sm:$0xff]
      %v212 = vld [vmem:[%s186 + $0x58] sm:$0xff]
      %v213 = vld [vmem:[%s186 + $0x60] sm:$0xff]
      %v214 = vld [vmem:[%s186 + $0x68] sm:$0xff]
      %v215 = vld [vmem:[%s186 + $0x70] sm:$0xff]
      %v216 = vld [vmem:[%s186 + $0x78] sm:$0xff]
      %v217 = vld [vmem:[%s186 + $0x80] sm:$0xff]
      %v218 = vld [vmem:[%s186 + $0x88] sm:$0xff]
      %v219 = vld [vmem:[%s186 + $0x90] sm:$0xff]
      %v220 = vld [vmem:[%s186 + $0x98] sm:$0xff]
      %v221 = vld [vmem:[%s186 + $0xa0] sm:$0xff]
      %v222 = vld [vmem:[%s186 + $0xa8] sm:$0xff]
      %v223 = vld [vmem:[%s186 + $0xb0] sm:$0xff]
      %v224 = vld [vmem:[%s186 + $0xb8] sm:$0xff]
      %v225 = vld [vmem:[%s186 + $0xc0] sm:$0xff]
      %v226 = vld [vmem:[%s186 + $0xc8] sm:$0xff]
      %v227 = vld [vmem:[%s186 + $0xd0] sm:$0xff]
      %v228 = vld [vmem:[%s186 + $0xd8] sm:$0xff]
      %v229 = vld [vmem:[%s186 + $0xe0] sm:$0xff]
      %v230 = vld [vmem:[%s186 + $0xe8] sm:$0xff]
      %v231 = vld [vmem:[%s186 + $0xf0] sm:$0xff]
      %v232 = vld [vmem:[%s186 + $0xf8] sm:$0xff]
      %v233 = vld [vmem:[%s186 + $0x100] sm:$0xff]
      %v234 = vld [vmem:[%s186 + $0x108] sm:$0xff]
      %v235 = vld [vmem:[%s186 + $0x110] sm:$0xff]
      %v236 = vld [vmem:[%s186 + $0x118] sm:$0xff]
      %v237 = vld [vmem:[%s186 + $0x120] sm:$0xff]
      %v238 = vld [vmem:[%s186 + $0x128] sm:$0xff]
      %v239 = vld [vmem:[%s186 + $0x130] sm:$0xff]
      %v240 = vld [vmem:[%s186 + $0x138] sm:$0xff]
      %v241 = vld [vmem:[%s186 + $0x140] sm:$0xff]
      %v242 = vld [vmem:[%s186 + $0x148] sm:$0xff]
      %v243 = vld [vmem:[%s186 + $0x150] sm:$0xff]
      %v244 = vld [vmem:[%s186 + $0x158] sm:$0xff]
      %v245 = vld [vmem:[%s186 + $0x160] sm:$0xff]
      %v246 = vld [vmem:[%s186 + $0x168] sm:$0xff]
      %v247 = vld [vmem:[%s186 + $0x170] sm:$0xff]
      %v248 = vld [vmem:[%s186 + $0x178] sm:$0xff]
      %v249 = vld [vmem:[%s186 + $0x180] sm:$0xff]
      %v250 = vld [vmem:[%s186 + $0x188] sm:$0xff]
      %v251 = vld [vmem:[%s186 + $0x190] sm:$0xff]
      %v252 = vld [vmem:[%s186 + $0x198] sm:$0xff]
      %v253 = vld [vmem:[%s186 + $0x1a0] sm:$0xff]
      %v254 = vld [vmem:[%s186 + $0x1a8] sm:$0xff]
      %v255 = vld [vmem:[%s186 + $0x1b0] sm:$0xff]
      %v256 = vld [vmem:[%s186 + $0x1b8] sm:$0xff]
      %v257 = vld [vmem:[%s186 + $0x1c0] sm:$0xff]
      %v258 = vld [vmem:[%s186 + $0x1c8] sm:$0xff]
      %v259 = vld [vmem:[%s186 + $0x1d0] sm:$0xff]
      %v260 = vld [vmem:[%s186 + $0x1d8] sm:$0xff]
      %v261 = vld [vmem:[%s186 + $0x1e0] sm:$0xff]
      %v262 = vld [vmem:[%s186 + $0x1e8] sm:$0xff]
      %v263 = vld [vmem:[%s186 + $0x1f0] sm:$0xff]
      %v264 = vld [vmem:[%s186 + $0x1f8] sm:$0xff]
      %v265 = vld [vmem:[%s186 + $0x200] sm:$0xff]
      %v266 = vld [vmem:[%s186 + $0x208] sm:$0xff]
      %v267 = vld [vmem:[%s186 + $0x210] sm:$0xff]
      %v268 = vld [vmem:[%s186 + $0x218] sm:$0xff]
      %v269 = vld [vmem:[%s186 + $0x220] sm:$0xff]
      %v270 = vld [vmem:[%s186 + $0x228] sm:$0xff]
      %v271 = vld [vmem:[%s186 + $0x230] sm:$0xff]
      %v272 = vld [vmem:[%s186 + $0x238] sm:$0xff]
      %v273 = vld [vmem:[%s186 + $0x240] sm:$0xff]
      %v274 = vld [vmem:[%s186 + $0x248] sm:$0xff]
      %v275 = vld [vmem:[%s186 + $0x250] sm:$0xff]
      %v276 = vld [vmem:[%s186 + $0x258] sm:$0xff]
      %v277 = vld [vmem:[%s186 + $0x260] sm:$0xff]
      %v278 = vld [vmem:[%s186 + $0x268] sm:$0xff]
      %v279 = vld [vmem:[%s186 + $0x270] sm:$0xff]
      %v280 = vld [vmem:[%s186 + $0x278] sm:$0xff]
      %v281 = vld [vmem:[%s186 + $0x280] sm:$0xff]
      %v282 = vld [vmem:[%s186 + $0x288] sm:$0xff]
      %v283 = vld [vmem:[%s186 + $0x290] sm:$0xff]
      %v284 = vld [vmem:[%s186 + $0x298] sm:$0xff]
      %v285 = vld [vmem:[%s186 + $0x2a0] sm:$0xff]
      %v286 = vld [vmem:[%s186 + $0x2a8] sm:$0xff]
      %v287 = vld [vmem:[%s186 + $0x2b0] sm:$0xff]
      %v288 = vld [vmem:[%s186 + $0x2b8] sm:$0xff]
      %v289 = vld [vmem:[%s186 + $0x2c0] sm:$0xff]
      %v290 = vld [vmem:[%s186 + $0x2c8] sm:$0xff]
      %v291 = vld [vmem:[%s186 + $0x2d0] sm:$0xff]
      %v292 = vld [vmem:[%s186 + $0x2d8] sm:$0xff]
      %v293 = vld [vmem:[%s186 + $0x2e0] sm:$0xff]
      %v294 = vld [vmem:[%s186 + $0x2e8] sm:$0xff]
      %v295 = vld [vmem:[%s186 + $0x2f0] sm:$0xff]
      %v296 = vld [vmem:[%s186 + $0x2f8] sm:$0xff]
      %v297 = vld [vmem:[%s186 + $0x300] sm:$0xff]
      %v298 = vld [vmem:[%s186 + $0x308] sm:$0xff]
      %v299 = vld [vmem:[%s186 + $0x310] sm:$0xff]
      %v300 = vld [vmem:[%s186 + $0x318] sm:$0xff]
      %v301 = vld [vmem:[%s186 + $0x320] sm:$0xff]
      %v302 = vld [vmem:[%s186 + $0x328] sm:$0xff]
      %v303 = vld [vmem:[%s186 + $0x330] sm:$0xff]
      %v304 = vld [vmem:[%s186 + $0x338] sm:$0xff]
      %v305 = vld [vmem:[%s186 + $0x340] sm:$0xff]
      %v306 = vld [vmem:[%s186 + $0x348] sm:$0xff]
      %v307 = vld [vmem:[%s186 + $0x350] sm:$0xff]
      %v308 = vld [vmem:[%s186 + $0x358] sm:$0xff]
      %v309 = vld [vmem:[%s186 + $0x360] sm:$0xff]
      %v310 = vld [vmem:[%s186 + $0x368] sm:$0xff]
      %v311 = vld [vmem:[%s186 + $0x370] sm:$0xff]
      %v312 = vld [vmem:[%s186 + $0x378] sm:$0xff]
      %v313 = vld [vmem:[%s186 + $0x380] sm:$0xff]
      %v314 = vld [vmem:[%s186 + $0x388] sm:$0xff]
      %v315 = vld [vmem:[%s186 + $0x390] sm:$0xff]
      %v316 = vld [vmem:[%s186 + $0x398] sm:$0xff]
      %v317 = vld [vmem:[%s186 + $0x3a0] sm:$0xff]
      %v318 = vld [vmem:[%s186 + $0x3a8] sm:$0xff]
      %v319 = vld [vmem:[%s186 + $0x3b0] sm:$0xff]
      %v320 = vld [vmem:[%s186 + $0x3b8] sm:$0xff]
      %v321 = vld [vmem:[%s186 + $0x3c0] sm:$0xff]
      %v322 = vld [vmem:[%s186 + $0x3c8] sm:$0xff]
      %v323 = vld [vmem:[%s186 + $0x3d0] sm:$0xff]
      %v324 = vld [vmem:[%s186 + $0x3d8] sm:$0xff]
      %v325 = vld [vmem:[%s186 + $0x3e0] sm:$0xff]
      %v326 = vld [vmem:[%s186 + $0x3e8] sm:$0xff]
      %v327 = vld [vmem:[%s186 + $0x3f0] sm:$0xff]
      %v328 = vld [vmem:[%s186 + $0x3f8] sm:$0xff]
      %v329 = vld [vmem:[%s186 + $0x400] sm:$0xff]
      %v330 = vld [vmem:[%s186 + $0x408] sm:$0xff]
      %v331 = vld [vmem:[%s186 + $0x410] sm:$0xff]
      %v332 = vld [vmem:[%s186 + $0x418] sm:$0xff]
      %v333 = vld [vmem:[%s186 + $0x420] sm:$0xff]
      %v334 = vld [vmem:[%s186 + $0x428] sm:$0xff]
      %v335 = vld [vmem:[%s186 + $0x430] sm:$0xff]
      %v336 = vld [vmem:[%s186 + $0x438] sm:$0xff]
      %v337 = vld [vmem:[%s186 + $0x440] sm:$0xff]
      %v338 = vld [vmem:[%s186 + $0x448] sm:$0xff]
      %v339 = vld [vmem:[%s186 + $0x450] sm:$0xff]
      %v340 = vld [vmem:[%s186 + $0x458] sm:$0xff]
      %v341 = vld [vmem:[%s186 + $0x460] sm:$0xff]
      %v342 = vld [vmem:[%s186 + $0x468] sm:$0xff]
      %v343 = vld [vmem:[%s186 + $0x470] sm:$0xff]
      %v344 = vld [vmem:[%s186 + $0x478] sm:$0xff]
      %v345 = vld [vmem:[%s186 + $0x480] sm:$0xff]
      %v346 = vld [vmem:[%s186 + $0x488] sm:$0xff]
      %v347 = vld [vmem:[%s186 + $0x490] sm:$0xff]
      %v348 = vld [vmem:[%s186 + $0x498] sm:$0xff]
      %v349 = vld [vmem:[%s186 + $0x4a0] sm:$0xff]
      %v350 = vld [vmem:[%s186 + $0x4a8] sm:$0xff]
      %v351 = vld [vmem:[%s186 + $0x4b0] sm:$0xff]
      %v352 = vld [vmem:[%s186 + $0x4b8] sm:$0xff]
      %v353 = vld [vmem:[%s186 + $0x4c0] sm:$0xff]
      %v354 = vld [vmem:[%s186 + $0x4c8] sm:$0xff]
      %v355 = vld [vmem:[%s0] sm:$0xff]
      %v356 = vld [vmem:[%s0 + $0x8] sm:$0xff]
      %v357 = vld [vmem:[%s0 + $0x10] sm:$0xff]
      %v358 = vld [vmem:[%s0 + $0x18] sm:$0xff]
      %v359 = vld [vmem:[%s0 + $0x20] sm:$0xff]
      %v360 = vld [vmem:[%s0 + $0x28] sm:$0xff]
      %v361 = vld [vmem:[%s0 + $0x30] sm:$0xff]
      %v362 = vld [vmem:[%s0 + $0x38] sm:$0xff]
      %v363 = vld [vmem:[%s0 + $0x40] sm:$0xff]
      %v364 = vld [vmem:[%s0 + $0x48] sm:$0xff]
      %v365 = vld [vmem:[%s0 + $0x50] sm:$0xff]
      %v366 = vld [vmem:[%s0 + $0x58] sm:$0xff]
      %v367 = vld [vmem:[%s0 + $0x60] sm:$0xff]
      %v368 = vld [vmem:[%s0 + $0x68] sm:$0xff]
      %v369 = vld [vmem:[%s0 + $0x70] sm:$0xff]
      %v370 = vld [vmem:[%s0 + $0x78] sm:$0xff]
      %v371 = vld [vmem:[%s0 + $0x80] sm:$0xff]
      %v372 = vld [vmem:[%s0 + $0x88] sm:$0xff]
      %v373 = vld [vmem:[%s0 + $0x90] sm:$0xff]
      %v374 = vld [vmem:[%s0 + $0x98] sm:$0xff]
      %v375 = vld [vmem:[%s0 + $0xa0] sm:$0xff]
      %v376 = vld [vmem:[%s0 + $0xa8] sm:$0xff]
      %v377 = vld [vmem:[%s0 + $0xb0] sm:$0xff]
      %v378 = vld [vmem:[%s0 + $0xb8] sm:$0xff]
      %v379 = vld [vmem:[%s0 + $0xc0] sm:$0xff]
      %v380 = vld [vmem:[%s0 + $0xc8] sm:$0xff]
      %v381 = vld [vmem:[%s0 + $0xd0] sm:$0xff]
      %v382 = vld [vmem:[%s0 + $0xd8] sm:$0xff]
      %v383 = vld [vmem:[%s0 + $0xe0] sm:$0xff]
      %v384 = vld [vmem:[%s0 + $0xe8] sm:$0xff]
      %v385 = vld [vmem:[%s0 + $0xf0] sm:$0xff]
      %v386 = vld [vmem:[%s0 + $0xf8] sm:$0xff]
      %v387 = vld [vmem:[%s0 + $0x100] sm:$0xff]
      %v388 = vld [vmem:[%s0 + $0x108] sm:$0xff]
      %v389 = vld [vmem:[%s0 + $0x110] sm:$0xff]
      %v390 = vld [vmem:[%s0 + $0x118] sm:$0xff]
      %v391 = vld [vmem:[%s0 + $0x120] sm:$0xff]
      %v392 = vld [vmem:[%s0 + $0x128] sm:$0xff]
      %v393 = vld [vmem:[%s0 + $0x130] sm:$0xff]
      %v394 = vld [vmem:[%s0 + $0x138] sm:$0xff]
      %v395 = vld [vmem:[%s0 + $0x140] sm:$0xff]
      %v396 = vld [vmem:[%s0 + $0x148] sm:$0xff]
      %v397 = vld [vmem:[%s0 + $0x150] sm:$0xff]
      %v398 = vld [vmem:[%s0 + $0x158] sm:$0xff]
      %v399 = vld [vmem:[%s0 + $0x160] sm:$0xff]
      %v400 = vld [vmem:[%s0 + $0x168] sm:$0xff]
      %v401 = vld [vmem:[%s0 + $0x170] sm:$0xff]
      %v402 = vld [vmem:[%s0 + $0x178] sm:$0xff]
      %v403 = vld [vmem:[%s0 + $0x180] sm:$0xff]
      %v404 = vld [vmem:[%s0 + $0x188] sm:$0xff]
      %v405 = vld [vmem:[%s0 + $0x190] sm:$0xff]
      %v406 = vld [vmem:[%s0 + $0x198] sm:$0xff]
      %v407 = vld [vmem:[%s0 + $0x1a0] sm:$0xff]
      %v408 = vld [vmem:[%s0 + $0x1a8] sm:$0xff]
      %v409 = vld [vmem:[%s0 + $0x1b0] sm:$0xff]
      %v410 = vld [vmem:[%s0 + $0x1b8] sm:$0xff]
      %v411 = vld [vmem:[%s0 + $0x1c0] sm:$0xff]
      %v412 = vld [vmem:[%s0 + $0x1c8] sm:$0xff]
      %v413 = vld [vmem:[%s0 + $0x1d0] sm:$0xff]
      %v414 = vld [vmem:[%s0 + $0x1d8] sm:$0xff]
      %v415 = vld [vmem:[%s0 + $0x1e0] sm:$0xff]
      %v416 = vld [vmem:[%s0 + $0x1e8] sm:$0xff]
      %v417 = vld [vmem:[%s0 + $0x1f0] sm:$0xff]
      %v418 = vld [vmem:[%s0 + $0x1f8] sm:$0xff]
      %v419 = vld [vmem:[%s0 + $0x200] sm:$0xff]
      %v420 = vld [vmem:[%s0 + $0x208] sm:$0xff]
      %v421 = vld [vmem:[%s0 + $0x210] sm:$0xff]
      %v422 = vld [vmem:[%s0 + $0x218] sm:$0xff]
      %v423 = vld [vmem:[%s0 + $0x220] sm:$0xff]
      %v424 = vld [vmem:[%s0 + $0x228] sm:$0xff]
      %v425 = vld [vmem:[%s0 + $0x230] sm:$0xff]
      %v426 = vld [vmem:[%s0 + $0x238] sm:$0xff]
      %v427 = vld [vmem:[%s0 + $0x240] sm:$0xff]
      %v428 = vld [vmem:[%s0 + $0x248] sm:$0xff]
      %v429 = vld [vmem:[%s0 + $0x250] sm:$0xff]
      %v430 = vld [vmem:[%s0 + $0x258] sm:$0xff]
      %v431 = vld [vmem:[%s0 + $0x260] sm:$0xff]
      %v432 = vld [vmem:[%s0 + $0x268] sm:$0xff]
      %v433 = vld [vmem:[%s0 + $0x270] sm:$0xff]
      %v434 = vld [vmem:[%s0 + $0x278] sm:$0xff]
      %v435 = vld [vmem:[%s0 + $0x280] sm:$0xff]
      %v436 = vld [vmem:[%s0 + $0x288] sm:$0xff]
      %v437 = vld [vmem:[%s0 + $0x290] sm:$0xff]
      %v438 = vld [vmem:[%s0 + $0x298] sm:$0xff]
      %v439 = vld [vmem:[%s0 + $0x2a0] sm:$0xff]
      %v440 = vld [vmem:[%s0 + $0x2a8] sm:$0xff]
      %v441 = vld [vmem:[%s0 + $0x2b0] sm:$0xff]
      %v442 = vld [vmem:[%s0 + $0x2b8] sm:$0xff]
      %v443 = vld [vmem:[%s0 + $0x2c0] sm:$0xff]
      %v444 = vld [vmem:[%s0 + $0x2c8] sm:$0xff]
      %v445 = vld [vmem:[%s0 + $0x2d0] sm:$0xff]
      %v446 = vld [vmem:[%s0 + $0x2d8] sm:$0xff]
      %v447 = vld [vmem:[%s0 + $0x2e0] sm:$0xff]
      %v448 = vld [vmem:[%s0 + $0x2e8] sm:$0xff]
      %v449 = vld [vmem:[%s0 + $0x2f0] sm:$0xff]
      %v450 = vld [vmem:[%s0 + $0x2f8] sm:$0xff]
      %v451 = vld [vmem:[%s0 + $0x300] sm:$0xff]
      %v452 = vld [vmem:[%s0 + $0x308] sm:$0xff]
      %v453 = vld [vmem:[%s0 + $0x310] sm:$0xff]
      %v454 = vld [vmem:[%s0 + $0x318] sm:$0xff]
      %v455 = vld [vmem:[%s0 + $0x320] sm:$0xff]
      %v456 = vld [vmem:[%s0 + $0x328] sm:$0xff]
      %v457 = vld [vmem:[%s0 + $0x330] sm:$0xff]
      %v458 = vld [vmem:[%s0 + $0x338] sm:$0xff]
      %v459 = vld [vmem:[%s0 + $0x340] sm:$0xff]
      %v460 = vld [vmem:[%s0 + $0x348] sm:$0xff]
      %v461 = vld [vmem:[%s0 + $0x350] sm:$0xff]
      %v462 = vld [vmem:[%s0 + $0x358] sm:$0xff]
      %v463 = vld [vmem:[%s0 + $0x360] sm:$0xff]
      %v464 = vld [vmem:[%s0 + $0x368] sm:$0xff]
      %v465 = vld [vmem:[%s0 + $0x370] sm:$0xff]
      %v466 = vld [vmem:[%s0 + $0x378] sm:$0xff]
      %v467 = vld [vmem:[%s0 + $0x380] sm:$0xff]
      %v468 = vld [vmem:[%s0 + $0x388] sm:$0xff]
      %v469 = vld [vmem:[%s0 + $0x390] sm:$0xff]
      %v470 = vld [vmem:[%s0 + $0x398] sm:$0xff]
      %v471 = vld [vmem:[%s0 + $0x3a0] sm:$0xff]
      %v472 = vld [vmem:[%s0 + $0x3a8] sm:$0xff]
      %v473 = vld [vmem:[%s0 + $0x3b0] sm:$0xff]
      %v474 = vld [vmem:[%s0 + $0x3b8] sm:$0xff]
      %v475 = vld [vmem:[%s0 + $0x3c0] sm:$0xff]
      %v476 = vld [vmem:[%s0 + $0x3c8] sm:$0xff]
      %v477 = vld [vmem:[%s0 + $0x3d0] sm:$0xff]
      %v478 = vld [vmem:[%s0 + $0x3d8] sm:$0xff]
      %v479 = vld [vmem:[%s0 + $0x3e0] sm:$0xff]
      %v480 = vld [vmem:[%s0 + $0x3e8] sm:$0xff]
      %v481 = vld [vmem:[%s0 + $0x3f0] sm:$0xff]
      %v482 = vld [vmem:[%s0 + $0x3f8] sm:$0xff]
      %v483 = vld [vmem:[%s0 + $0x400] sm:$0xff]
      %v484 = vld [vmem:[%s0 + $0x408] sm:$0xff]
      %v485 = vld [vmem:[%s0 + $0x410] sm:$0xff]
      %v486 = vld [vmem:[%s0 + $0x418] sm:$0xff]
      %v487 = vld [vmem:[%s0 + $0x420] sm:$0xff]
      %v488 = vld [vmem:[%s0 + $0x428] sm:$0xff]
      %v489 = vld [vmem:[%s0 + $0x430] sm:$0xff]
      %v490 = vld [vmem:[%s0 + $0x438] sm:$0xff]
      %v491 = vld [vmem:[%s0 + $0x440] sm:$0xff]
      %v492 = vld [vmem:[%s0 + $0x448] sm:$0xff]
      %v493 = vld [vmem:[%s0 + $0x450] sm:$0xff]
      %v494 = vld [vmem:[%s0 + $0x458] sm:$0xff]
      %v495 = vld [vmem:[%s0 + $0x460] sm:$0xff]
      %v496 = vld [vmem:[%s0 + $0x468] sm:$0xff]
      %v497 = vld [vmem:[%s0 + $0x470] sm:$0xff]
      %v498 = vld [vmem:[%s0 + $0x478] sm:$0xff]
      %v499 = vld [vmem:[%s0 + $0x480] sm:$0xff]
      %v500 = vld [vmem:[%s0 + $0x488] sm:$0xff]
      %v501 = vld [vmem:[%s0 + $0x490] sm:$0xff]
      %v502 = vld [vmem:[%s0 + $0x498] sm:$0xff]
      %v503 = vld [vmem:[%s0 + $0x4a0] sm:$0xff]
      %v504 = vld [vmem:[%s0 + $0x4a8] sm:$0xff]
      %v505 = vld [vmem:[%s0 + $0x4b0] sm:$0xff]
      %v506 = vld [vmem:[%s0 + $0x4b8] sm:$0xff]
      %v507 = vld [vmem:[%s0 + $0x4c0] sm:$0xff]
      %v508 = vld [vmem:[%s0 + $0x4c8] sm:$0xff]
      %v509 = vld [vmem:[%s0 + $0x4d0] sm:$0xff]
      %v510 = vld [vmem:[%s0 + $0x4d8] sm:$0xff]
      %v511 = vld [vmem:[%s0 + $0x4e0] sm:$0xff]
      %v512 = vld [vmem:[%s0 + $0x4e8] sm:$0xff]
      %v513 = vld [vmem:[%s0 + $0x4f0] sm:$0xff]
      %v514 = vld [vmem:[%s0 + $0x4f8] sm:$0xff]
      %v515 = vld [vmem:[%s0 + $0x500] sm:$0xff]
      %v516 = vld [vmem:[%s0 + $0x508] sm:$0xff]
      %v517 = vld [vmem:[%s0 + $0x510] sm:$0xff]
      %v518 = vld [vmem:[%s0 + $0x518] sm:$0xff]
      %v519 = vld [vmem:[%s0 + $0x520] sm:$0xff]
      %v520 = vld [vmem:[%s0 + $0x528] sm:$0xff]
      %v521 = vld [vmem:[%s0 + $0x530] sm:$0xff]
      %v522 = vld [vmem:[%s0 + $0x538] sm:$0xff]
      %v523 = vld [vmem:[%s0 + $0x540] sm:$0xff]
      %v524 = vld [vmem:[%s0 + $0x548] sm:$0xff]
      %v525 = vld [vmem:[%s0 + $0x550] sm:$0xff]
      %v526 = vld [vmem:[%s0 + $0x558] sm:$0xff]
      %v527 = vld [vmem:[%s0 + $0x560] sm:$0xff]
      %v528 = vld [vmem:[%s0 + $0x568] sm:$0xff]
      %v529 = vld [vmem:[%s0 + $0x570] sm:$0xff]
      %v530 = vld [vmem:[%s0 + $0x578] sm:$0xff]
      %v531 = vld [vmem:[%s0 + $0x580] sm:$0xff]
      %v532 = vld [vmem:[%s0 + $0x588] sm:$0xff]
      %v533 = vld [vmem:[%s0 + $0x590] sm:$0xff]
      %v534 = vld [vmem:[%s0 + $0x598] sm:$0xff]
      %v535 = vld [vmem:[%s0 + $0x5a0] sm:$0xff]
      %v536 = vld [vmem:[%s0 + $0x5a8] sm:$0xff]
      %v537 = vld [vmem:[%s0 + $0x5b0] sm:$0xff]
      %v538 = vld [vmem:[%s0 + $0x5b8] sm:$0xff]
      %v539 = vld [vmem:[%s0 + $0x5c0] sm:$0xff]
      %v540 = vld [vmem:[%s0 + $0x5c8] sm:$0xff]
      %v541 = vld [vmem:[%s0 + $0x5d0] sm:$0xff]
      %v542 = vld [vmem:[%s0 + $0x5d8] sm:$0xff]
      %v543 = vld [vmem:[%s0 + $0x5e0] sm:$0xff]
      %v544 = vld [vmem:[%s0 + $0x5e8] sm:$0xff]
      %v545 = vld [vmem:[%s0 + $0x5f0] sm:$0xff]
      %v546 = vld [vmem:[%s0 + $0x5f8] sm:$0xff]
      %v547 = vld [vmem:[%s0 + $0x600] sm:$0xff]
      %v548 = vld [vmem:[%s0 + $0x608] sm:$0xff]
      %v549 = vld [vmem:[%s0 + $0x610] sm:$0xff]
      %v550 = vld [vmem:[%s0 + $0x618] sm:$0xff]
      %v551 = vld [vmem:[%s0 + $0x620] sm:$0xff]
      %v552 = vld [vmem:[%s0 + $0x628] sm:$0xff]
      %v553 = vld [vmem:[%s0 + $0x630] sm:$0xff]
      %v554 = vld [vmem:[%s0 + $0x638] sm:$0xff]
      %v555 = vld [vmem:[%s0 + $0x640] sm:$0xff]
      %v556 = vld [vmem:[%s0 + $0x648] sm:$0xff]
      %v557 = vld [vmem:[%s0 + $0x650] sm:$0xff]
      %v558 = vld [vmem:[%s0 + $0x658] sm:$0xff]
      %v559 = vld [vmem:[%s0 + $0x660] sm:$0xff]
      %v560 = vld [vmem:[%s0 + $0x668] sm:$0xff]
      %v561 = vld [vmem:[%s0 + $0x670] sm:$0xff]
      %v562 = vld [vmem:[%s0 + $0x678] sm:$0xff]
      %v563 = vld [vmem:[%s0 + $0x680] sm:$0xff]
      %v564 = vld [vmem:[%s0 + $0x688] sm:$0xff]
      %v565 = vld [vmem:[%s0 + $0x690] sm:$0xff]
      %v566 = vld [vmem:[%s0 + $0x698] sm:$0xff]
      %v567 = vld [vmem:[%s0 + $0x6a0] sm:$0xff]
      %v568 = vld [vmem:[%s0 + $0x6a8] sm:$0xff]
      %v569 = vld [vmem:[%s0 + $0x6b0] sm:$0xff]
      %v570 = vld [vmem:[%s0 + $0x6b8] sm:$0xff]
      %v571 = vld [vmem:[%s0 + $0x6c0] sm:$0xff]
      %v572 = vld [vmem:[%s0 + $0x6c8] sm:$0xff]
      %v573 = vld [vmem:[%s0 + $0x6d0] sm:$0xff]
      %v574 = vld [vmem:[%s0 + $0x6d8] sm:$0xff]
      %v575 = vld [vmem:[%s0 + $0x6e0] sm:$0xff]
      %v576 = vld [vmem:[%s0 + $0x6e8] sm:$0xff]
      %v577 = vld [vmem:[%s0 + $0x6f0] sm:$0xff]
      %v578 = vld [vmem:[%s0 + $0x6f8] sm:$0xff]
      %v579 = vld [vmem:[%s0 + $0x700] sm:$0xff]
      %v580 = vld [vmem:[%s0 + $0x708] sm:$0xff]
      %v581 = vld [vmem:[%s0 + $0x710] sm:$0xff]
      %v582 = vld [vmem:[%s0 + $0x718] sm:$0xff]
      %v583 = vld [vmem:[%s0 + $0x720] sm:$0xff]
      %v584 = vld [vmem:[%s0 + $0x728] sm:$0xff]
      %v585 = vld [vmem:[%s0 + $0x730] sm:$0xff]
      %v586 = vld [vmem:[%s0 + $0x738] sm:$0xff]
      %v587 = vld [vmem:[%s0 + $0x740] sm:$0xff]
      %v588 = vld [vmem:[%s0 + $0x748] sm:$0xff]
      %v589 = vld [vmem:[%s0 + $0x750] sm:$0xff]
      %v590 = vld [vmem:[%s0 + $0x758] sm:$0xff]
      %v591 = vld [vmem:[%s0 + $0x760] sm:$0xff]
      %v592 = vld [vmem:[%s0 + $0x768] sm:$0xff]
      %v593 = vld [vmem:[%s0 + $0x770] sm:$0xff]
      %v594 = vld [vmem:[%s0 + $0x778] sm:$0xff]
      %v595 = vld [vmem:[%s0 + $0x780] sm:$0xff]
      %v596 = vld [vmem:[%s0 + $0x788] sm:$0xff]
      %v597 = vld [vmem:[%s0 + $0x790] sm:$0xff]
      %v598 = vld [vmem:[%s0 + $0x798] sm:$0xff]
      %v599 = vld [vmem:[%s0 + $0x7a0] sm:$0xff]
      %v600 = vld [vmem:[%s0 + $0x7a8] sm:$0xff]
      %v601 = vld [vmem:[%s0 + $0x7b0] sm:$0xff]
      %v602 = vld [vmem:[%s0 + $0x7b8] sm:$0xff]
      %v603 = vld [vmem:[%s0 + $0x7c0] sm:$0xff]
      %v604 = vld [vmem:[%s0 + $0x7c8] sm:$0xff]
      %v605 = vld [vmem:[%s0 + $0x7d0] sm:$0xff]
      %v606 = vld [vmem:[%s0 + $0x7d8] sm:$0xff]
      %v607 = vld [vmem:[%s0 + $0x7e0] sm:$0xff]
      %v608 = vld [vmem:[%s0 + $0x7e8] sm:$0xff]
      %v609 = vld [vmem:[%s0 + $0x7f0] sm:$0xff]
      %v610 = vld [vmem:[%s0 + $0x7f8] sm:$0xff]
      %v611 = vld [vmem:[%s0 + $0x800] sm:$0xff]
      %v612 = vld [vmem:[%s0 + $0x808] sm:$0xff]
      %v613 = vld [vmem:[%s0 + $0x810] sm:$0xff]
      %v614 = vld [vmem:[%s0 + $0x818] sm:$0xff]
      %v615 = vld [vmem:[%s0 + $0x820] sm:$0xff]
      %v616 = vld [vmem:[%s0 + $0x828] sm:$0xff]
      %v617 = vld [vmem:[%s0 + $0x830] sm:$0xff]
      %v618 = vld [vmem:[%s0 + $0x838] sm:$0xff]
      %v619 = vld [vmem:[%s0 + $0x840] sm:$0xff]
      %v620 = vld [vmem:[%s0 + $0x848] sm:$0xff]
      %v621 = vld [vmem:[%s0 + $0x850] sm:$0xff]
      %v622 = vld [vmem:[%s0 + $0x858] sm:$0xff]
      %v623 = vld [vmem:[%s0 + $0x860] sm:$0xff]
      %v624 = vld [vmem:[%s0 + $0x868] sm:$0xff]
      %v625 = vld [vmem:[%s0 + $0x870] sm:$0xff]
      %v626 = vld [vmem:[%s0 + $0x878] sm:$0xff]
      %v627 = vld [vmem:[%s0 + $0x880] sm:$0xff]
      %v628 = vld [vmem:[%s0 + $0x888] sm:$0xff]
      %v629 = vld [vmem:[%s0 + $0x890] sm:$0xff]
      %v630 = vld [vmem:[%s0 + $0x898] sm:$0xff]
      %v631 = vld [vmem:[%s0 + $0x8a0] sm:$0xff]
      %v632 = vld [vmem:[%s0 + $0x8a8] sm:$0xff]
      %v633 = vld [vmem:[%s0 + $0x8b0] sm:$0xff]
      %v634 = vld [vmem:[%s0 + $0x8b8] sm:$0xff]
      %v635 = vld [vmem:[%s0 + $0x8c0] sm:$0xff]
      %v636 = vld [vmem:[%s0 + $0x8c8] sm:$0xff]
      %v637 = vld [vmem:[%s0 + $0x8d0] sm:$0xff]
      %v638 = vld [vmem:[%s0 + $0x8d8] sm:$0xff]
      %v639 = vld [vmem:[%s0 + $0x8e0] sm:$0xff]
      %v640 = vld [vmem:[%s0 + $0x8e8] sm:$0xff]
      %v641 = vld [vmem:[%s0 + $0x8f0] sm:$0xff]
      %v642 = vld [vmem:[%s0 + $0x8f8] sm:$0xff]
      %v643 = vld [vmem:[%s0 + $0x900] sm:$0xff]
      %v644 = vld [vmem:[%s0 + $0x908] sm:$0xff]
      %v645 = vld [vmem:[%s0 + $0x910] sm:$0xff]
      %v646 = vld [vmem:[%s0 + $0x918] sm:$0xff]
      %v647 = vld [vmem:[%s0 + $0x920] sm:$0xff]
      %v648 = vld [vmem:[%s0 + $0x928] sm:$0xff]
      %v649 = vld [vmem:[%s0 + $0x930] sm:$0xff]
      %v650 = vld [vmem:[%s0 + $0x938] sm:$0xff]
      %v651 = vld [vmem:[%s0 + $0x940] sm:$0xff]
      %v652 = vld [vmem:[%s0 + $0x948] sm:$0xff]
      %v653 = vld [vmem:[%s0 + $0x950] sm:$0xff]
      %v654 = vld [vmem:[%s0 + $0x958] sm:$0xff]
      %v655 = vld [vmem:[%s0 + $0x960] sm:$0xff]
      %v656 = vld [vmem:[%s0 + $0x968] sm:$0xff]
      %v657 = vld [vmem:[%s0 + $0x970] sm:$0xff]
      %v658 = vld [vmem:[%s0 + $0x978] sm:$0xff]
      %v659 = vld [vmem:[%s0 + $0x980] sm:$0xff]
      %v660 = vld [vmem:[%s0 + $0x988] sm:$0xff]
      %v661 = vld [vmem:[%s0 + $0x990] sm:$0xff]
      %v662 = vld [vmem:[%s0 + $0x998] sm:$0xff]
      %v663 = vld [vmem:[%s0 + $0x9a0] sm:$0xff]
      %v664 = vld [vmem:[%s0 + $0x9a8] sm:$0xff]
      %v665 = vld [vmem:[%s0 + $0x9b0] sm:$0xff]
      %v666 = vld [vmem:[%s0 + $0x9b8] sm:$0xff]
      %v667 = vld [vmem:[%s0 + $0x9c0] sm:$0xff]
      %v668 = vld [vmem:[%s0 + $0x9c8] sm:$0xff]
      %v669 = vld [vmem:[%s0 + $0x9d0] sm:$0xff]
      %v670 = vld [vmem:[%s0 + $0x9d8] sm:$0xff]
      %v671 = vld [vmem:[%s0 + $0x9e0] sm:$0xff]
      %v672 = vld [vmem:[%s0 + $0x9e8] sm:$0xff]
      %v673 = vld [vmem:[%s0 + $0x9f0] sm:$0xff]
      %v674 = vld [vmem:[%s0 + $0x9f8] sm:$0xff]
      %v675 = vld [vmem:[%s0 + $0xa00] sm:$0xff]
      %v676 = vld [vmem:[%s0 + $0xa08] sm:$0xff]
      %v677 = vld [vmem:[%s0 + $0xa10] sm:$0xff]
      %v678 = vld [vmem:[%s0 + $0xa18] sm:$0xff]
      %v679 = vld [vmem:[%s0 + $0xa20] sm:$0xff]
      %v680 = vld [vmem:[%s0 + $0xa28] sm:$0xff]
      %v681 = vld [vmem:[%s0 + $0xa30] sm:$0xff]
      %v682 = vld [vmem:[%s0 + $0xa38] sm:$0xff]
      %v683 = vld [vmem:[%s0 + $0xa40] sm:$0xff]
      %v684 = vld [vmem:[%s0 + $0xa48] sm:$0xff]
      %v685 = vld [vmem:[%s0 + $0xa50] sm:$0xff]
      %v686 = vld [vmem:[%s0 + $0xa58] sm:$0xff]
      %v687 = vld [vmem:[%s0 + $0xa60] sm:$0xff]
      %v688 = vld [vmem:[%s0 + $0xa68] sm:$0xff]
      %v689 = vld [vmem:[%s0 + $0xa70] sm:$0xff]
      %v690 = vld [vmem:[%s0 + $0xa78] sm:$0xff]
      %vm691 = vcmask 523264
      %v693 = vsel %vm691, %v211, 0
      %v696 = vsel %vm691, %v222, 0
      %v699 = vsel %vm691, %v233, 0
      %v702 = vsel %vm691, %v244, 0
      %v705 = vsel %vm691, %v255, 0
      %v708 = vsel %vm691, %v266, 0
      %v711 = vsel %vm691, %v277, 0
      %v714 = vsel %vm691, %v288, 0
      %v717 = vsel %vm691, %v299, 0
      %v720 = vsel %vm691, %v310, 0
      %v723 = vsel %vm691, %v321, 0
      %v726 = vsel %vm691, %v332, 0
      %v729 = vsel %vm691, %v343, 0
      %v732 = vsel %vm691, %v354, 0
      %734 = vmatprep.subr.mxu0 %v386
      %735 = vmatpush1.msra.mxu0 %v385
      %736 = vmatprep.subr.mxu0 %v384
      %737 = vmatpush1.msra.mxu0 %v383
      %738 = vmatprep.subr.mxu0 %v382
      %739 = vmatpush1.msra.mxu0 %v381
      %740 = vmatprep.subr.mxu0 %v380
      %741 = vmatpush1.msra.mxu0 %v379
      %742 = vmatprep.subr.mxu0 %v378
      %743 = vmatpush1.msra.mxu0 %v377
      %744 = vmatprep.subr.mxu0 %v376
      %745 = vmatpush1.msra.mxu0 %v375
      %746 = vmatprep.subr.mxu0 %v374
      %747 = vmatpush1.msra.mxu0 %v373
      %748 = vmatprep.subr.mxu0 %v372
      %749 = vmatpush1.msra.mxu0 %v371
      %750 = vmatprep.subr.mxu0 %v370
      %751 = vmatpush1.msra.mxu0 %v369
      %752 = vmatprep.subr.mxu0 %v368
      %753 = vmatpush1.msra.mxu0 %v367
      %754 = vmatprep.subr.mxu0 %v366
      %755 = vmatpush1.msra.mxu0 %v365
      %756 = vmatprep.subr.mxu0 %v364
      %757 = vmatpush1.msra.mxu0 %v363
      %758 = vmatprep.subr.mxu0 %v362
      %759 = vmatpush1.msra.mxu0 %v361
      %760 = vmatprep.subr.mxu0 %v360
      %761 = vmatpush1.msra.mxu0 %v359
      %762 = vmatprep.subr.mxu0 %v358
      %763 = vmatpush1.msra.mxu0 %v357
      %764 = vmatprep.subr.mxu0 %v356
      %765 = vmatpush1.msra.mxu0 %v355
      %766 = vmatprep.subr.mxu0 %v418
      %767 = vmatpush2.msra.mxu0 %v417
      %768 = vmatprep.subr.mxu0 %v416
      %769 = vmatpush2.msra.mxu0 %v415
      %770 = vmatprep.subr.mxu0 %v414
      %771 = vmatpush2.msra.mxu0 %v413
      %772 = vmatprep.subr.mxu0 %v412
      %773 = vmatpush2.msra.mxu0 %v411
      %774 = vmatprep.subr.mxu0 %v410
      %775 = vmatpush2.msra.mxu0 %v409
      %776 = vmatprep.subr.mxu0 %v408
      %777 = vmatpush2.msra.mxu0 %v407
      %778 = vmatprep.subr.mxu0 %v406
      %779 = vmatpush2.msra.mxu0 %v405
      %780 = vmatprep.subr.mxu0 %v404
      %781 = vmatpush2.msra.mxu0 %v403
      %782 = vmatprep.subr.mxu0 %v402
      %783 = vmatpush2.msra.mxu0 %v401
      %784 = vmatprep.subr.mxu0 %v400
      %785 = vmatpush2.msra.mxu0 %v399
      %786 = vmatprep.subr.mxu0 %v398
      %787 = vmatpush2.msra.mxu0 %v397
      %788 = vmatprep.subr.mxu0 %v396
      %789 = vmatpush2.msra.mxu0 %v395
      %790 = vmatprep.subr.mxu0 %v394
      %791 = vmatpush2.msra.mxu0 %v393
      %792 = vmatprep.subr.mxu0 %v392
      %793 = vmatpush2.msra.mxu0 %v391
      %794 = vmatprep.subr.mxu0 %v390
      %795 = vmatpush2.msra.mxu0 %v389
      %796 = vmatprep.subr.mxu0 %v388
      %797 = vmatpush2.msra.mxu0 %v387
      %798 = vmatprep.mubr.f32.mxu0 %v202
      %799 = vmatmul.mubr.f32.gmra.mxu0 %v201
      %v800 = vpop.f32.mrf.mxu0
      %v801 = vadd.f32 0.0, %v800
      %v802 = vpop.f32.mrf.mxu0
      %v803 = vadd.f32 0.0, %v802
      %804 = vmatprep.mubr.f32.mxu0 %v213
      %805 = vmatmul.mubr.f32.gmra.mxu0 %v212
      %v806 = vpop.f32.mrf.mxu0
      %v807 = vadd.f32 0.0, %v806
      %v808 = vpop.f32.mrf.mxu0
      %v809 = vadd.f32 0.0, %v808
      %810 = vmatprep.mubr.f32.mxu0 %v224
      %811 = vmatmul.mubr.f32.gmra.mxu0 %v223
      %v812 = vpop.f32.mrf.mxu0
      %v813 = vadd.f32 0.0, %v812
      %v814 = vpop.f32.mrf.mxu0
      %v815 = vadd.f32 0.0, %v814
      %816 = vmatprep.mubr.f32.mxu0 %v235
      %817 = vmatmul.mubr.f32.gmra.mxu0 %v234
      %v818 = vpop.f32.mrf.mxu0
      %v819 = vadd.f32 0.0, %v818
      %v820 = vpop.f32.mrf.mxu0
      %v821 = vadd.f32 0.0, %v820
      %822 = vmatprep.mubr.f32.mxu0 %v246
      %823 = vmatmul.mubr.f32.gmra.mxu0 %v245
      %v824 = vpop.f32.mrf.mxu0
      %v825 = vadd.f32 0.0, %v824
      %v826 = vpop.f32.mrf.mxu0
      %v827 = vadd.f32 0.0, %v826
      %828 = vmatprep.mubr.f32.mxu0 %v257
      %829 = vmatmul.mubr.f32.gmra.mxu0 %v256
      %v830 = vpop.f32.mrf.mxu0
      %v831 = vadd.f32 0.0, %v830
      %v832 = vpop.f32.mrf.mxu0
      %v833 = vadd.f32 0.0, %v832
      %834 = vmatprep.mubr.f32.mxu0 %v268
      %835 = vmatmul.mubr.f32.gmra.mxu0 %v267
      %v836 = vpop.f32.mrf.mxu0
      %v837 = vadd.f32 0.0, %v836
      %v838 = vpop.f32.mrf.mxu0
      %v839 = vadd.f32 0.0, %v838
      %840 = vmatprep.mubr.f32.mxu0 %v279
      %841 = vmatmul.mubr.f32.gmra.mxu0 %v278
      %v842 = vpop.f32.mrf.mxu0
      %v843 = vadd.f32 0.0, %v842
      %v844 = vpop.f32.mrf.mxu0
      %v845 = vadd.f32 0.0, %v844
      %846 = vmatprep.mubr.f32.mxu0 %v290
      %847 = vmatmul.mubr.f32.gmra.mxu0 %v289
      %v848 = vpop.f32.mrf.mxu0
      %v849 = vadd.f32 0.0, %v848
      %v850 = vpop.f32.mrf.mxu0
      %v851 = vadd.f32 0.0, %v850
      %852 = vmatprep.mubr.f32.mxu0 %v301
      %853 = vmatmul.mubr.f32.gmra.mxu0 %v300
      %v854 = vpop.f32.mrf.mxu0
      %v855 = vadd.f32 0.0, %v854
      %v856 = vpop.f32.mrf.mxu0
      %v857 = vadd.f32 0.0, %v856
      %858 = vmatprep.mubr.f32.mxu0 %v312
      %859 = vmatmul.mubr.f32.gmra.mxu0 %v311
      %v860 = vpop.f32.mrf.mxu0
      %v861 = vadd.f32 0.0, %v860
      %v862 = vpop.f32.mrf.mxu0
      %v863 = vadd.f32 0.0, %v862
      %864 = vmatprep.mubr.f32.mxu0 %v323
      %865 = vmatmul.mubr.f32.gmra.mxu0 %v322
      %v866 = vpop.f32.mrf.mxu0
      %v867 = vadd.f32 0.0, %v866
      %v868 = vpop.f32.mrf.mxu0
      %v869 = vadd.f32 0.0, %v868
      %870 = vmatprep.mubr.f32.mxu0 %v334
      %871 = vmatmul.mubr.f32.gmra.mxu0 %v333
      %v872 = vpop.f32.mrf.mxu0
      %v873 = vadd.f32 0.0, %v872
      %v874 = vpop.f32.mrf.mxu0
      %v875 = vadd.f32 0.0, %v874
      %876 = vmatprep.mubr.f32.mxu0 %v345
      %877 = vmatmul.mubr.f32.gmra.mxu0 %v344
      %v878 = vpop.f32.mrf.mxu0
      %v879 = vadd.f32 0.0, %v878
      %v880 = vpop.f32.mrf.mxu0
      %v881 = vadd.f32 0.0, %v880
      %882 = vdwg.mxu0
      %883 = vmatprep.subr.mxu0 %v450
      %884 = vmatpush1.msra.mxu0 %v449
      %885 = vmatprep.subr.mxu0 %v448
      %886 = vmatpush1.msra.mxu0 %v447
      %887 = vmatprep.subr.mxu0 %v446
      %888 = vmatpush1.msra.mxu0 %v445
      %889 = vmatprep.subr.mxu0 %v444
      %890 = vmatpush1.msra.mxu0 %v443
      %891 = vmatprep.subr.mxu0 %v442
      %892 = vmatpush1.msra.mxu0 %v441
      %893 = vmatprep.subr.mxu0 %v440
      %894 = vmatpush1.msra.mxu0 %v439
      %895 = vmatprep.subr.mxu0 %v438
      %896 = vmatpush1.msra.mxu0 %v437
      %897 = vmatprep.subr.mxu0 %v436
      %898 = vmatpush1.msra.mxu0 %v435
      %899 = vmatprep.subr.mxu0 %v434
      %900 = vmatpush1.msra.mxu0 %v433
      %901 = vmatprep.subr.mxu0 %v432
      %902 = vmatpush1.msra.mxu0 %v431
      %903 = vmatprep.subr.mxu0 %v430
      %904 = vmatpush1.msra.mxu0 %v429
      %905 = vmatprep.subr.mxu0 %v428
      %906 = vmatpush1.msra.mxu0 %v427
      %907 = vmatprep.subr.mxu0 %v426
      %908 = vmatpush1.msra.mxu0 %v425
      %909 = vmatprep.subr.mxu0 %v424
      %910 = vmatpush1.msra.mxu0 %v423
      %911 = vmatprep.subr.mxu0 %v422
      %912 = vmatpush1.msra.mxu0 %v421
      %913 = vmatprep.subr.mxu0 %v420
      %914 = vmatpush1.msra.mxu0 %v419
      %915 = vmatprep.subr.mxu0 %v482
      %916 = vmatpush2.msra.mxu0 %v481
      %917 = vmatprep.subr.mxu0 %v480
      %918 = vmatpush2.msra.mxu0 %v479
      %919 = vmatprep.subr.mxu0 %v478
      %920 = vmatpush2.msra.mxu0 %v477
      %921 = vmatprep.subr.mxu0 %v476
      %922 = vmatpush2.msra.mxu0 %v475
      %923 = vmatprep.subr.mxu0 %v474
      %924 = vmatpush2.msra.mxu0 %v473
      %925 = vmatprep.subr.mxu0 %v472
      %926 = vmatpush2.msra.mxu0 %v471
      %927 = vmatprep.subr.mxu0 %v470
      %928 = vmatpush2.msra.mxu0 %v469
      %929 = vmatprep.subr.mxu0 %v468
      %930 = vmatpush2.msra.mxu0 %v467
      %931 = vmatprep.subr.mxu0 %v466
      %932 = vmatpush2.msra.mxu0 %v465
      %933 = vmatprep.subr.mxu0 %v464
      %934 = vmatpush2.msra.mxu0 %v463
      %935 = vmatprep.subr.mxu0 %v462
      %936 = vmatpush2.msra.mxu0 %v461
      %937 = vmatprep.subr.mxu0 %v460
      %938 = vmatpush2.msra.mxu0 %v459
      %939 = vmatprep.subr.mxu0 %v458
      %940 = vmatpush2.msra.mxu0 %v457
      %941 = vmatprep.subr.mxu0 %v456
      %942 = vmatpush2.msra.mxu0 %v455
      %943 = vmatprep.subr.mxu0 %v454
      %944 = vmatpush2.msra.mxu0 %v453
      %945 = vmatprep.subr.mxu0 %v452
      %946 = vmatpush2.msra.mxu0 %v451
      %947 = vmatprep.mubr.f32.mxu0 %v204
      %948 = vmatmul.mubr.f32.gmra.mxu0 %v203
      %v949 = vpop.f32.mrf.mxu0
      %v950 = vadd.f32 %v801, %v949
      %v951 = vpop.f32.mrf.mxu0
      %v952 = vadd.f32 %v803, %v951
      %953 = vmatprep.mubr.f32.mxu0 %v215
      %954 = vmatmul.mubr.f32.gmra.mxu0 %v214
      %v955 = vpop.f32.mrf.mxu0
      %v956 = vadd.f32 %v807, %v955
      %v957 = vpop.f32.mrf.mxu0
      %v958 = vadd.f32 %v809, %v957
      %959 = vmatprep.mubr.f32.mxu0 %v226
      %960 = vmatmul.mubr.f32.gmra.mxu0 %v225
      %v961 = vpop.f32.mrf.mxu0
      %v962 = vadd.f32 %v813, %v961
      %v963 = vpop.f32.mrf.mxu0
      %v964 = vadd.f32 %v815, %v963
      %965 = vmatprep.mubr.f32.mxu0 %v237
      %966 = vmatmul.mubr.f32.gmra.mxu0 %v236
      %v967 = vpop.f32.mrf.mxu0
      %v968 = vadd.f32 %v819, %v967
      %v969 = vpop.f32.mrf.mxu0
      %v970 = vadd.f32 %v821, %v969
      %971 = vmatprep.mubr.f32.mxu0 %v248
      %972 = vmatmul.mubr.f32.gmra.mxu0 %v247
      %v973 = vpop.f32.mrf.mxu0
      %v974 = vadd.f32 %v825, %v973
      %v975 = vpop.f32.mrf.mxu0
      %v976 = vadd.f32 %v827, %v975
      %977 = vmatprep.mubr.f32.mxu0 %v259
      %978 = vmatmul.mubr.f32.gmra.mxu0 %v258
      %v979 = vpop.f32.mrf.mxu0
      %v980 = vadd.f32 %v831, %v979
      %v981 = vpop.f32.mrf.mxu0
      %v982 = vadd.f32 %v833, %v981
      %983 = vmatprep.mubr.f32.mxu0 %v270
      %984 = vmatmul.mubr.f32.gmra.mxu0 %v269
      %v985 = vpop.f32.mrf.mxu0
      %v986 = vadd.f32 %v837, %v985
      %v987 = vpop.f32.mrf.mxu0
      %v988 = vadd.f32 %v839, %v987
      %989 = vmatprep.mubr.f32.mxu0 %v281
      %990 = vmatmul.mubr.f32.gmra.mxu0 %v280
      %v991 = vpop.f32.mrf.mxu0
      %v992 = vadd.f32 %v843, %v991
      %v993 = vpop.f32.mrf.mxu0
      %v994 = vadd.f32 %v845, %v993
      %995 = vmatprep.mubr.f32.mxu0 %v292
      %996 = vmatmul.mubr.f32.gmra.mxu0 %v291
      %v997 = vpop.f32.mrf.mxu0
      %v998 = vadd.f32 %v849, %v997
      %v999 = vpop.f32.mrf.mxu0
      %v1000 = vadd.f32 %v851, %v999
      %1001 = vmatprep.mubr.f32.mxu0 %v303
      %1002 = vmatmul.mubr.f32.gmra.mxu0 %v302
      %v1003 = vpop.f32.mrf.mxu0
      %v1004 = vadd.f32 %v855, %v1003
      %v1005 = vpop.f32.mrf.mxu0
      %v1006 = vadd.f32 %v857, %v1005
      %1007 = vmatprep.mubr.f32.mxu0 %v314
      %1008 = vmatmul.mubr.f32.gmra.mxu0 %v313
      %v1009 = vpop.f32.mrf.mxu0
      %v1010 = vadd.f32 %v861, %v1009
      %v1011 = vpop.f32.mrf.mxu0
      %v1012 = vadd.f32 %v863, %v1011
      %1013 = vmatprep.mubr.f32.mxu0 %v325
      %1014 = vmatmul.mubr.f32.gmra.mxu0 %v324
      %v1015 = vpop.f32.mrf.mxu0
      %v1016 = vadd.f32 %v867, %v1015
      %v1017 = vpop.f32.mrf.mxu0
      %v1018 = vadd.f32 %v869, %v1017
      %1019 = vmatprep.mubr.f32.mxu0 %v336
      %1020 = vmatmul.mubr.f32.gmra.mxu0 %v335
      %v1021 = vpop.f32.mrf.mxu0
      %v1022 = vadd.f32 %v873, %v1021
      %v1023 = vpop.f32.mrf.mxu0
      %v1024 = vadd.f32 %v875, %v1023
      %1025 = vmatprep.mubr.f32.mxu0 %v347
      %1026 = vmatmul.mubr.f32.gmra.mxu0 %v346
      %v1027 = vpop.f32.mrf.mxu0
      %v1028 = vadd.f32 %v879, %v1027
      %v1029 = vpop.f32.mrf.mxu0
      %v1030 = vadd.f32 %v881, %v1029
      %1031 = vdwg.mxu0
      %1032 = vmatprep.subr.mxu0 %v514
      %1033 = vmatpush1.msra.mxu0 %v513
      %1034 = vmatprep.subr.mxu0 %v512
      %1035 = vmatpush1.msra.mxu0 %v511
      %1036 = vmatprep.subr.mxu0 %v510
      %1037 = vmatpush1.msra.mxu0 %v509
      %1038 = vmatprep.subr.mxu0 %v508
      %1039 = vmatpush1.msra.mxu0 %v507
      %1040 = vmatprep.subr.mxu0 %v506
      %1041 = vmatpush1.msra.mxu0 %v505
      %1042 = vmatprep.subr.mxu0 %v504
      %1043 = vmatpush1.msra.mxu0 %v503
      %1044 = vmatprep.subr.mxu0 %v502
      %1045 = vmatpush1.msra.mxu0 %v501
      %1046 = vmatprep.subr.mxu0 %v500
      %1047 = vmatpush1.msra.mxu0 %v499
      %1048 = vmatprep.subr.mxu0 %v498
      %1049 = vmatpush1.msra.mxu0 %v497
      %1050 = vmatprep.subr.mxu0 %v496
      %1051 = vmatpush1.msra.mxu0 %v495
      %1052 = vmatprep.subr.mxu0 %v494
      %1053 = vmatpush1.msra.mxu0 %v493
      %1054 = vmatprep.subr.mxu0 %v492
      %1055 = vmatpush1.msra.mxu0 %v491
      %1056 = vmatprep.subr.mxu0 %v490
      %1057 = vmatpush1.msra.mxu0 %v489
      %1058 = vmatprep.subr.mxu0 %v488
      %1059 = vmatpush1.msra.mxu0 %v487
      %1060 = vmatprep.subr.mxu0 %v486
      %1061 = vmatpush1.msra.mxu0 %v485
      %1062 = vmatprep.subr.mxu0 %v484
      %1063 = vmatpush1.msra.mxu0 %v483
      %1064 = vmatprep.subr.mxu0 %v546
      %1065 = vmatpush2.msra.mxu0 %v545
      %1066 = vmatprep.subr.mxu0 %v544
      %1067 = vmatpush2.msra.mxu0 %v543
      %1068 = vmatprep.subr.mxu0 %v542
      %1069 = vmatpush2.msra.mxu0 %v541
      %1070 = vmatprep.subr.mxu0 %v540
      %1071 = vmatpush2.msra.mxu0 %v539
      %1072 = vmatprep.subr.mxu0 %v538
      %1073 = vmatpush2.msra.mxu0 %v537
      %1074 = vmatprep.subr.mxu0 %v536
      %1075 = vmatpush2.msra.mxu0 %v535
      %1076 = vmatprep.subr.mxu0 %v534
      %1077 = vmatpush2.msra.mxu0 %v533
      %1078 = vmatprep.subr.mxu0 %v532
      %1079 = vmatpush2.msra.mxu0 %v531
      %1080 = vmatprep.subr.mxu0 %v530
      %1081 = vmatpush2.msra.mxu0 %v529
      %1082 = vmatprep.subr.mxu0 %v528
      %1083 = vmatpush2.msra.mxu0 %v527
      %1084 = vmatprep.subr.mxu0 %v526
      %1085 = vmatpush2.msra.mxu0 %v525
      %1086 = vmatprep.subr.mxu0 %v524
      %1087 = vmatpush2.msra.mxu0 %v523
      %1088 = vmatprep.subr.mxu0 %v522
      %1089 = vmatpush2.msra.mxu0 %v521
      %1090 = vmatprep.subr.mxu0 %v520
      %1091 = vmatpush2.msra.mxu0 %v519
      %1092 = vmatprep.subr.mxu0 %v518
      %1093 = vmatpush2.msra.mxu0 %v517
      %1094 = vmatprep.subr.mxu0 %v516
      %1095 = vmatpush2.msra.mxu0 %v515
      %1096 = vmatprep.mubr.f32.mxu0 %v206
      %1097 = vmatmul.mubr.f32.gmra.mxu0 %v205
      %v1098 = vpop.f32.mrf.mxu0
      %v1099 = vadd.f32 %v950, %v1098
      %v1100 = vpop.f32.mrf.mxu0
      %v1101 = vadd.f32 %v952, %v1100
      %1102 = vmatprep.mubr.f32.mxu0 %v217
      %1103 = vmatmul.mubr.f32.gmra.mxu0 %v216
      %v1104 = vpop.f32.mrf.mxu0
      %v1105 = vadd.f32 %v956, %v1104
      %v1106 = vpop.f32.mrf.mxu0
      %v1107 = vadd.f32 %v958, %v1106
      %1108 = vmatprep.mubr.f32.mxu0 %v228
      %1109 = vmatmul.mubr.f32.gmra.mxu0 %v227
      %v1110 = vpop.f32.mrf.mxu0
      %v1111 = vadd.f32 %v962, %v1110
      %v1112 = vpop.f32.mrf.mxu0
      %v1113 = vadd.f32 %v964, %v1112
      %1114 = vmatprep.mubr.f32.mxu0 %v239
      %1115 = vmatmul.mubr.f32.gmra.mxu0 %v238
      %v1116 = vpop.f32.mrf.mxu0
      %v1117 = vadd.f32 %v968, %v1116
      %v1118 = vpop.f32.mrf.mxu0
      %v1119 = vadd.f32 %v970, %v1118
      %1120 = vmatprep.mubr.f32.mxu0 %v250
      %1121 = vmatmul.mubr.f32.gmra.mxu0 %v249
      %v1122 = vpop.f32.mrf.mxu0
      %v1123 = vadd.f32 %v974, %v1122
      %v1124 = vpop.f32.mrf.mxu0
      %v1125 = vadd.f32 %v976, %v1124
      %1126 = vmatprep.mubr.f32.mxu0 %v261
      %1127 = vmatmul.mubr.f32.gmra.mxu0 %v260
      %v1128 = vpop.f32.mrf.mxu0
      %v1129 = vadd.f32 %v980, %v1128
      %v1130 = vpop.f32.mrf.mxu0
      %v1131 = vadd.f32 %v982, %v1130
      %1132 = vmatprep.mubr.f32.mxu0 %v272
      %1133 = vmatmul.mubr.f32.gmra.mxu0 %v271
      %v1134 = vpop.f32.mrf.mxu0
      %v1135 = vadd.f32 %v986, %v1134
      %v1136 = vpop.f32.mrf.mxu0
      %v1137 = vadd.f32 %v988, %v1136
      %1138 = vmatprep.mubr.f32.mxu0 %v283
      %1139 = vmatmul.mubr.f32.gmra.mxu0 %v282
      %v1140 = vpop.f32.mrf.mxu0
      %v1141 = vadd.f32 %v992, %v1140
      %v1142 = vpop.f32.mrf.mxu0
      %v1143 = vadd.f32 %v994, %v1142
      %1144 = vmatprep.mubr.f32.mxu0 %v294
      %1145 = vmatmul.mubr.f32.gmra.mxu0 %v293
      %v1146 = vpop.f32.mrf.mxu0
      %v1147 = vadd.f32 %v998, %v1146
      %v1148 = vpop.f32.mrf.mxu0
      %v1149 = vadd.f32 %v1000, %v1148
      %1150 = vmatprep.mubr.f32.mxu0 %v305
      %1151 = vmatmul.mubr.f32.gmra.mxu0 %v304
      %v1152 = vpop.f32.mrf.mxu0
      %v1153 = vadd.f32 %v1004, %v1152
      %v1154 = vpop.f32.mrf.mxu0
      %v1155 = vadd.f32 %v1006, %v1154
      %1156 = vmatprep.mubr.f32.mxu0 %v316
      %1157 = vmatmul.mubr.f32.gmra.mxu0 %v315
      %v1158 = vpop.f32.mrf.mxu0
      %v1159 = vadd.f32 %v1010, %v1158
      %v1160 = vpop.f32.mrf.mxu0
      %v1161 = vadd.f32 %v1012, %v1160
      %1162 = vmatprep.mubr.f32.mxu0 %v327
      %1163 = vmatmul.mubr.f32.gmra.mxu0 %v326
      %v1164 = vpop.f32.mrf.mxu0
      %v1165 = vadd.f32 %v1016, %v1164
      %v1166 = vpop.f32.mrf.mxu0
      %v1167 = vadd.f32 %v1018, %v1166
      %1168 = vmatprep.mubr.f32.mxu0 %v338
      %1169 = vmatmul.mubr.f32.gmra.mxu0 %v337
      %v1170 = vpop.f32.mrf.mxu0
      %v1171 = vadd.f32 %v1022, %v1170
      %v1172 = vpop.f32.mrf.mxu0
      %v1173 = vadd.f32 %v1024, %v1172
      %1174 = vmatprep.mubr.f32.mxu0 %v349
      %1175 = vmatmul.mubr.f32.gmra.mxu0 %v348
      %v1176 = vpop.f32.mrf.mxu0
      %v1177 = vadd.f32 %v1028, %v1176
      %v1178 = vpop.f32.mrf.mxu0
      %v1179 = vadd.f32 %v1030, %v1178
      %1180 = vdwg.mxu0
      %1181 = vmatprep.subr.mxu0 %v578
      %1182 = vmatpush1.msra.mxu0 %v577
      %1183 = vmatprep.subr.mxu0 %v576
      %1184 = vmatpush1.msra.mxu0 %v575
      %1185 = vmatprep.subr.mxu0 %v574
      %1186 = vmatpush1.msra.mxu0 %v573
      %1187 = vmatprep.subr.mxu0 %v572
      %1188 = vmatpush1.msra.mxu0 %v571
      %1189 = vmatprep.subr.mxu0 %v570
      %1190 = vmatpush1.msra.mxu0 %v569
      %1191 = vmatprep.subr.mxu0 %v568
      %1192 = vmatpush1.msra.mxu0 %v567
      %1193 = vmatprep.subr.mxu0 %v566
      %1194 = vmatpush1.msra.mxu0 %v565
      %1195 = vmatprep.subr.mxu0 %v564
      %1196 = vmatpush1.msra.mxu0 %v563
      %1197 = vmatprep.subr.mxu0 %v562
      %1198 = vmatpush1.msra.mxu0 %v561
      %1199 = vmatprep.subr.mxu0 %v560
      %1200 = vmatpush1.msra.mxu0 %v559
      %1201 = vmatprep.subr.mxu0 %v558
      %1202 = vmatpush1.msra.mxu0 %v557
      %1203 = vmatprep.subr.mxu0 %v556
      %1204 = vmatpush1.msra.mxu0 %v555
      %1205 = vmatprep.subr.mxu0 %v554
      %1206 = vmatpush1.msra.mxu0 %v553
      %1207 = vmatprep.subr.mxu0 %v552
      %1208 = vmatpush1.msra.mxu0 %v551
      %1209 = vmatprep.subr.mxu0 %v550
      %1210 = vmatpush1.msra.mxu0 %v549
      %1211 = vmatprep.subr.mxu0 %v548
      %1212 = vmatpush1.msra.mxu0 %v547
      %1213 = vmatprep.subr.mxu0 %v610
      %1214 = vmatpush2.msra.mxu0 %v609
      %1215 = vmatprep.subr.mxu0 %v608
      %1216 = vmatpush2.msra.mxu0 %v607
      %1217 = vmatprep.subr.mxu0 %v606
      %1218 = vmatpush2.msra.mxu0 %v605
      %1219 = vmatprep.subr.mxu0 %v604
      %1220 = vmatpush2.msra.mxu0 %v603
      %1221 = vmatprep.subr.mxu0 %v602
      %1222 = vmatpush2.msra.mxu0 %v601
      %1223 = vmatprep.subr.mxu0 %v600
      %1224 = vmatpush2.msra.mxu0 %v599
      %1225 = vmatprep.subr.mxu0 %v598
      %1226 = vmatpush2.msra.mxu0 %v597
      %1227 = vmatprep.subr.mxu0 %v596
      %1228 = vmatpush2.msra.mxu0 %v595
      %1229 = vmatprep.subr.mxu0 %v594
      %1230 = vmatpush2.msra.mxu0 %v593
      %1231 = vmatprep.subr.mxu0 %v592
      %1232 = vmatpush2.msra.mxu0 %v591
      %1233 = vmatprep.subr.mxu0 %v590
      %1234 = vmatpush2.msra.mxu0 %v589
      %1235 = vmatprep.subr.mxu0 %v588
      %1236 = vmatpush2.msra.mxu0 %v587
      %1237 = vmatprep.subr.mxu0 %v586
      %1238 = vmatpush2.msra.mxu0 %v585
      %1239 = vmatprep.subr.mxu0 %v584
      %1240 = vmatpush2.msra.mxu0 %v583
      %1241 = vmatprep.subr.mxu0 %v582
      %1242 = vmatpush2.msra.mxu0 %v581
      %1243 = vmatprep.subr.mxu0 %v580
      %1244 = vmatpush2.msra.mxu0 %v579
      %1245 = vmatprep.mubr.f32.mxu0 %v208
      %1246 = vmatmul.mubr.f32.gmra.mxu0 %v207
      %v1247 = vpop.f32.mrf.mxu0
      %v1248 = vadd.f32 %v1099, %v1247
      %v1249 = vpop.f32.mrf.mxu0
      %v1250 = vadd.f32 %v1101, %v1249
      %1251 = vmatprep.mubr.f32.mxu0 %v219
      %1252 = vmatmul.mubr.f32.gmra.mxu0 %v218
      %v1253 = vpop.f32.mrf.mxu0
      %v1254 = vadd.f32 %v1105, %v1253
      %v1255 = vpop.f32.mrf.mxu0
      %v1256 = vadd.f32 %v1107, %v1255
      %1257 = vmatprep.mubr.f32.mxu0 %v230
      %1258 = vmatmul.mubr.f32.gmra.mxu0 %v229
      %v1259 = vpop.f32.mrf.mxu0
      %v1260 = vadd.f32 %v1111, %v1259
      %v1261 = vpop.f32.mrf.mxu0
      %v1262 = vadd.f32 %v1113, %v1261
      %1263 = vmatprep.mubr.f32.mxu0 %v241
      %1264 = vmatmul.mubr.f32.gmra.mxu0 %v240
      %v1265 = vpop.f32.mrf.mxu0
      %v1266 = vadd.f32 %v1117, %v1265
      %v1267 = vpop.f32.mrf.mxu0
      %v1268 = vadd.f32 %v1119, %v1267
      %1269 = vmatprep.mubr.f32.mxu0 %v252
      %1270 = vmatmul.mubr.f32.gmra.mxu0 %v251
      %v1271 = vpop.f32.mrf.mxu0
      %v1272 = vadd.f32 %v1123, %v1271
      %v1273 = vpop.f32.mrf.mxu0
      %v1274 = vadd.f32 %v1125, %v1273
      %1275 = vmatprep.mubr.f32.mxu0 %v263
      %1276 = vmatmul.mubr.f32.gmra.mxu0 %v262
      %v1277 = vpop.f32.mrf.mxu0
      %v1278 = vadd.f32 %v1129, %v1277
      %v1279 = vpop.f32.mrf.mxu0
      %v1280 = vadd.f32 %v1131, %v1279
      %1281 = vmatprep.mubr.f32.mxu0 %v274
      %1282 = vmatmul.mubr.f32.gmra.mxu0 %v273
      %v1283 = vpop.f32.mrf.mxu0
      %v1284 = vadd.f32 %v1135, %v1283
      %v1285 = vpop.f32.mrf.mxu0
      %v1286 = vadd.f32 %v1137, %v1285
      %1287 = vmatprep.mubr.f32.mxu0 %v285
      %1288 = vmatmul.mubr.f32.gmra.mxu0 %v284
      %v1289 = vpop.f32.mrf.mxu0
      %v1290 = vadd.f32 %v1141, %v1289
      %v1291 = vpop.f32.mrf.mxu0
      %v1292 = vadd.f32 %v1143, %v1291
      %1293 = vmatprep.mubr.f32.mxu0 %v296
      %1294 = vmatmul.mubr.f32.gmra.mxu0 %v295
      %v1295 = vpop.f32.mrf.mxu0
      %v1296 = vadd.f32 %v1147, %v1295
      %v1297 = vpop.f32.mrf.mxu0
      %v1298 = vadd.f32 %v1149, %v1297
      %1299 = vmatprep.mubr.f32.mxu0 %v307
      %1300 = vmatmul.mubr.f32.gmra.mxu0 %v306
      %v1301 = vpop.f32.mrf.mxu0
      %v1302 = vadd.f32 %v1153, %v1301
      %v1303 = vpop.f32.mrf.mxu0
      %v1304 = vadd.f32 %v1155, %v1303
      %1305 = vmatprep.mubr.f32.mxu0 %v318
      %1306 = vmatmul.mubr.f32.gmra.mxu0 %v317
      %v1307 = vpop.f32.mrf.mxu0
      %v1308 = vadd.f32 %v1159, %v1307
      %v1309 = vpop.f32.mrf.mxu0
      %v1310 = vadd.f32 %v1161, %v1309
      %1311 = vmatprep.mubr.f32.mxu0 %v329
      %1312 = vmatmul.mubr.f32.gmra.mxu0 %v328
      %v1313 = vpop.f32.mrf.mxu0
      %v1314 = vadd.f32 %v1165, %v1313
      %v1315 = vpop.f32.mrf.mxu0
      %v1316 = vadd.f32 %v1167, %v1315
      %1317 = vmatprep.mubr.f32.mxu0 %v340
      %1318 = vmatmul.mubr.f32.gmra.mxu0 %v339
      %v1319 = vpop.f32.mrf.mxu0
      %v1320 = vadd.f32 %v1171, %v1319
      %v1321 = vpop.f32.mrf.mxu0
      %v1322 = vadd.f32 %v1173, %v1321
      %1323 = vmatprep.mubr.f32.mxu0 %v351
      %1324 = vmatmul.mubr.f32.gmra.mxu0 %v350
      %v1325 = vpop.f32.mrf.mxu0
      %v1326 = vadd.f32 %v1177, %v1325
      %v1327 = vpop.f32.mrf.mxu0
      %v1328 = vadd.f32 %v1179, %v1327
      %1329 = vdwg.mxu0
      %1330 = vmatprep.subr.mxu0 %v642
      %1331 = vmatpush1.msra.mxu0 %v641
      %1332 = vmatprep.subr.mxu0 %v640
      %1333 = vmatpush1.msra.mxu0 %v639
      %1334 = vmatprep.subr.mxu0 %v638
      %1335 = vmatpush1.msra.mxu0 %v637
      %1336 = vmatprep.subr.mxu0 %v636
      %1337 = vmatpush1.msra.mxu0 %v635
      %1338 = vmatprep.subr.mxu0 %v634
      %1339 = vmatpush1.msra.mxu0 %v633
      %1340 = vmatprep.subr.mxu0 %v632
      %1341 = vmatpush1.msra.mxu0 %v631
      %1342 = vmatprep.subr.mxu0 %v630
      %1343 = vmatpush1.msra.mxu0 %v629
      %1344 = vmatprep.subr.mxu0 %v628
      %1345 = vmatpush1.msra.mxu0 %v627
      %1346 = vmatprep.subr.mxu0 %v626
      %1347 = vmatpush1.msra.mxu0 %v625
      %1348 = vmatprep.subr.mxu0 %v624
      %1349 = vmatpush1.msra.mxu0 %v623
      %1350 = vmatprep.subr.mxu0 %v622
      %1351 = vmatpush1.msra.mxu0 %v621
      %1352 = vmatprep.subr.mxu0 %v620
      %1353 = vmatpush1.msra.mxu0 %v619
      %1354 = vmatprep.subr.mxu0 %v618
      %1355 = vmatpush1.msra.mxu0 %v617
      %1356 = vmatprep.subr.mxu0 %v616
      %1357 = vmatpush1.msra.mxu0 %v615
      %1358 = vmatprep.subr.mxu0 %v614
      %1359 = vmatpush1.msra.mxu0 %v613
      %1360 = vmatprep.subr.mxu0 %v612
      %1361 = vmatpush1.msra.mxu0 %v611
      %1362 = vmatprep.subr.mxu0 %v674
      %1363 = vmatpush2.msra.mxu0 %v673
      %1364 = vmatprep.subr.mxu0 %v672
      %1365 = vmatpush2.msra.mxu0 %v671
      %1366 = vmatprep.subr.mxu0 %v670
      %1367 = vmatpush2.msra.mxu0 %v669
      %1368 = vmatprep.subr.mxu0 %v668
      %1369 = vmatpush2.msra.mxu0 %v667
      %1370 = vmatprep.subr.mxu0 %v666
      %1371 = vmatpush2.msra.mxu0 %v665
      %1372 = vmatprep.subr.mxu0 %v664
      %1373 = vmatpush2.msra.mxu0 %v663
      %1374 = vmatprep.subr.mxu0 %v662
      %1375 = vmatpush2.msra.mxu0 %v661
      %1376 = vmatprep.subr.mxu0 %v660
      %1377 = vmatpush2.msra.mxu0 %v659
      %1378 = vmatprep.subr.mxu0 %v658
      %1379 = vmatpush2.msra.mxu0 %v657
      %1380 = vmatprep.subr.mxu0 %v656
      %1381 = vmatpush2.msra.mxu0 %v655
      %1382 = vmatprep.subr.mxu0 %v654
      %1383 = vmatpush2.msra.mxu0 %v653
      %1384 = vmatprep.subr.mxu0 %v652
      %1385 = vmatpush2.msra.mxu0 %v651
      %1386 = vmatprep.subr.mxu0 %v650
      %1387 = vmatpush2.msra.mxu0 %v649
      %1388 = vmatprep.subr.mxu0 %v648
      %1389 = vmatpush2.msra.mxu0 %v647
      %1390 = vmatprep.subr.mxu0 %v646
      %1391 = vmatpush2.msra.mxu0 %v645
      %1392 = vmatprep.subr.mxu0 %v644
      %1393 = vmatpush2.msra.mxu0 %v643
      %1394 = vmatprep.mubr.f32.mxu0 %v210
      %1395 = vmatmul.mubr.f32.gmra.mxu0 %v209
      %v1396 = vpop.f32.mrf.mxu0
      %v1397 = vadd.f32 %v1248, %v1396
      %v1398 = vpop.f32.mrf.mxu0
      %v1399 = vadd.f32 %v1250, %v1398
      %1400 = vmatprep.mubr.f32.mxu0 %v221
      %1401 = vmatmul.mubr.f32.gmra.mxu0 %v220
      %v1402 = vpop.f32.mrf.mxu0
      %v1403 = vadd.f32 %v1254, %v1402
      %v1404 = vpop.f32.mrf.mxu0
      %v1405 = vadd.f32 %v1256, %v1404
      %1406 = vmatprep.mubr.f32.mxu0 %v232
      %1407 = vmatmul.mubr.f32.gmra.mxu0 %v231
      %v1408 = vpop.f32.mrf.mxu0
      %v1409 = vadd.f32 %v1260, %v1408
      %v1410 = vpop.f32.mrf.mxu0
      %v1411 = vadd.f32 %v1262, %v1410
      %1412 = vmatprep.mubr.f32.mxu0 %v243
      %1413 = vmatmul.mubr.f32.gmra.mxu0 %v242
      %v1414 = vpop.f32.mrf.mxu0
      %v1415 = vadd.f32 %v1266, %v1414
      %v1416 = vpop.f32.mrf.mxu0
      %v1417 = vadd.f32 %v1268, %v1416
      %1418 = vmatprep.mubr.f32.mxu0 %v254
      %1419 = vmatmul.mubr.f32.gmra.mxu0 %v253
      %v1420 = vpop.f32.mrf.mxu0
      %v1421 = vadd.f32 %v1272, %v1420
      %v1422 = vpop.f32.mrf.mxu0
      %v1423 = vadd.f32 %v1274, %v1422
      %1424 = vmatprep.mubr.f32.mxu0 %v265
      %1425 = vmatmul.mubr.f32.gmra.mxu0 %v264
      %v1426 = vpop.f32.mrf.mxu0
      %v1427 = vadd.f32 %v1278, %v1426
      %v1428 = vpop.f32.mrf.mxu0
      %v1429 = vadd.f32 %v1280, %v1428
      %1430 = vmatprep.mubr.f32.mxu0 %v276
      %1431 = vmatmul.mubr.f32.gmra.mxu0 %v275
      %v1432 = vpop.f32.mrf.mxu0
      %v1433 = vadd.f32 %v1284, %v1432
      %v1434 = vpop.f32.mrf.mxu0
      %v1435 = vadd.f32 %v1286, %v1434
      %1436 = vmatprep.mubr.f32.mxu0 %v287
      %1437 = vmatmul.mubr.f32.gmra.mxu0 %v286
      %v1438 = vpop.f32.mrf.mxu0
      %v1439 = vadd.f32 %v1290, %v1438
      %v1440 = vpop.f32.mrf.mxu0
      %v1441 = vadd.f32 %v1292, %v1440
      %1442 = vmatprep.mubr.f32.mxu0 %v298
      %1443 = vmatmul.mubr.f32.gmra.mxu0 %v297
      %v1444 = vpop.f32.mrf.mxu0
      %v1445 = vadd.f32 %v1296, %v1444
      %v1446 = vpop.f32.mrf.mxu0
      %v1447 = vadd.f32 %v1298, %v1446
      %1448 = vmatprep.mubr.f32.mxu0 %v309
      %1449 = vmatmul.mubr.f32.gmra.mxu0 %v308
      %v1450 = vpop.f32.mrf.mxu0
      %v1451 = vadd.f32 %v1302, %v1450
      %v1452 = vpop.f32.mrf.mxu0
      %v1453 = vadd.f32 %v1304, %v1452
      %1454 = vmatprep.mubr.f32.mxu0 %v320
      %1455 = vmatmul.mubr.f32.gmra.mxu0 %v319
      %v1456 = vpop.f32.mrf.mxu0
      %v1457 = vadd.f32 %v1308, %v1456
      %v1458 = vpop.f32.mrf.mxu0
      %v1459 = vadd.f32 %v1310, %v1458
      %1460 = vmatprep.mubr.f32.mxu0 %v331
      %1461 = vmatmul.mubr.f32.gmra.mxu0 %v330
      %v1462 = vpop.f32.mrf.mxu0
      %v1463 = vadd.f32 %v1314, %v1462
      %v1464 = vpop.f32.mrf.mxu0
      %v1465 = vadd.f32 %v1316, %v1464
      %1466 = vmatprep.mubr.f32.mxu0 %v342
      %1467 = vmatmul.mubr.f32.gmra.mxu0 %v341
      %v1468 = vpop.f32.mrf.mxu0
      %v1469 = vadd.f32 %v1320, %v1468
      %v1470 = vpop.f32.mrf.mxu0
      %v1471 = vadd.f32 %v1322, %v1470
      %1472 = vmatprep.mubr.f32.mxu0 %v353
      %1473 = vmatmul.mubr.f32.gmra.mxu0 %v352
      %v1474 = vpop.f32.mrf.mxu0
      %v1475 = vadd.f32 %v1326, %v1474
      %v1476 = vpop.f32.mrf.mxu0
      %v1477 = vadd.f32 %v1328, %v1476
      %1478 = vdwg.mxu0
      %1479 = vmatprep.subr.mxu0 0.0
      %1480 = vmatpush1.msra.mxu0 0.0
      %1481 = vmatprep.subr.mxu0 0.0
      %1482 = vmatpush1.msra.mxu0 0.0
      %1483 = vmatprep.subr.mxu0 0.0
      %1484 = vmatpush1.msra.mxu0 0.0
      %1485 = vmatprep.subr.mxu0 0.0
      %1486 = vmatpush1.msra.mxu0 0.0
      %1487 = vmatprep.subr.mxu0 0.0
      %1488 = vmatpush1.msra.mxu0 0.0
      %1489 = vmatprep.subr.mxu0 0.0
      %1490 = vmatpush1.msra.mxu0 0.0
      %1491 = vmatprep.subr.mxu0 0.0
      %1492 = vmatpush1.msra.mxu0 0.0
      %1493 = vmatprep.subr.mxu0 0.0
      %1494 = vmatpush1.msra.mxu0 0.0
      %1495 = vmatprep.subr.mxu0 %v690
      %1496 = vmatpush1.msra.mxu0 %v689
      %1497 = vmatprep.subr.mxu0 %v688
      %1498 = vmatpush1.msra.mxu0 %v687
      %1499 = vmatprep.subr.mxu0 %v686
      %1500 = vmatpush1.msra.mxu0 %v685
      %1501 = vmatprep.subr.mxu0 %v684
      %1502 = vmatpush1.msra.mxu0 %v683
      %1503 = vmatprep.subr.mxu0 %v682
      %1504 = vmatpush1.msra.mxu0 %v681
      %1505 = vmatprep.subr.mxu0 %v680
      %1506 = vmatpush1.msra.mxu0 %v679
      %1507 = vmatprep.subr.mxu0 %v678
      %1508 = vmatpush1.msra.mxu0 %v677
      %1509 = vmatprep.subr.mxu0 %v676
      %1510 = vmatpush1.msra.mxu0 %v675
      %1511 = vmatprep.subr.mxu0 0.0
      %1512 = vmatpush2.msra.mxu0 0.0
      %1513 = vmatprep.subr.mxu0 0.0
      %1514 = vmatpush2.msra.mxu0 0.0
      %1515 = vmatprep.subr.mxu0 0.0
      %1516 = vmatpush2.msra.mxu0 0.0
      %1517 = vmatprep.subr.mxu0 0.0
      %1518 = vmatpush2.msra.mxu0 0.0
      %1519 = vmatprep.subr.mxu0 0.0
      %1520 = vmatpush2.msra.mxu0 0.0
      %1521 = vmatprep.subr.mxu0 0.0
      %1522 = vmatpush2.msra.mxu0 0.0
      %1523 = vmatprep.subr.mxu0 0.0
      %1524 = vmatpush2.msra.mxu0 0.0
      %1525 = vmatprep.subr.mxu0 0.0
      %1526 = vmatpush2.msra.mxu0 0.0
      %1527 = vmatprep.subr.mxu0 0.0
      %1528 = vmatpush2.msra.mxu0 0.0
      %1529 = vmatprep.subr.mxu0 0.0
      %1530 = vmatpush2.msra.mxu0 0.0
      %1531 = vmatprep.subr.mxu0 0.0
      %1532 = vmatpush2.msra.mxu0 0.0
      %1533 = vmatprep.subr.mxu0 0.0
      %1534 = vmatpush2.msra.mxu0 0.0
      %1535 = vmatprep.subr.mxu0 0.0
      %1536 = vmatpush2.msra.mxu0 0.0
      %1537 = vmatprep.subr.mxu0 0.0
      %1538 = vmatpush2.msra.mxu0 0.0
      %1539 = vmatprep.subr.mxu0 0.0
      %1540 = vmatpush2.msra.mxu0 0.0
      %1541 = vmatprep.subr.mxu0 0.0
      %1542 = vmatpush2.msra.mxu0 0.0
      %1543 = vmatprep.mubr.f32.mxu0 0.0
      %1544 = vmatmul.mubr.f32.gmra.mxu0 %v693
      %v1545 = vpop.f32.mrf.mxu0
      %v1546 = vadd.f32 %v1397, %v1545
      %v1547 = vpop.f32.mrf.mxu0
      %v1548 = vadd.f32 %v1399, %v1547
      %1549 = vmatprep.mubr.f32.mxu0 0.0
      %1550 = vmatmul.mubr.f32.gmra.mxu0 %v696
      %v1551 = vpop.f32.mrf.mxu0
      %v1552 = vadd.f32 %v1403, %v1551
      %v1553 = vpop.f32.mrf.mxu0
      %v1554 = vadd.f32 %v1405, %v1553
      %1555 = vmatprep.mubr.f32.mxu0 0.0
      %1556 = vmatmul.mubr.f32.gmra.mxu0 %v699
      %v1557 = vpop.f32.mrf.mxu0
      %v1558 = vadd.f32 %v1409, %v1557
      %v1559 = vpop.f32.mrf.mxu0
      %v1560 = vadd.f32 %v1411, %v1559
      %1561 = vmatprep.mubr.f32.mxu0 0.0
      %1562 = vmatmul.mubr.f32.gmra.mxu0 %v702
      %v1563 = vpop.f32.mrf.mxu0
      %v1564 = vadd.f32 %v1415, %v1563
      %v1565 = vpop.f32.mrf.mxu0
      %v1566 = vadd.f32 %v1417, %v1565
      %1567 = vmatprep.mubr.f32.mxu0 0.0
      %1568 = vmatmul.mubr.f32.gmra.mxu0 %v705
      %v1569 = vpop.f32.mrf.mxu0
      %v1570 = vadd.f32 %v1421, %v1569
      %v1571 = vpop.f32.mrf.mxu0
      %v1572 = vadd.f32 %v1423, %v1571
      %1573 = vmatprep.mubr.f32.mxu0 0.0
      %1574 = vmatmul.mubr.f32.gmra.mxu0 %v708
      %v1575 = vpop.f32.mrf.mxu0
      %v1576 = vadd.f32 %v1427, %v1575
      %v1577 = vpop.f32.mrf.mxu0
      %v1578 = vadd.f32 %v1429, %v1577
      %1579 = vmatprep.mubr.f32.mxu0 0.0
      %1580 = vmatmul.mubr.f32.gmra.mxu0 %v711
      %v1581 = vpop.f32.mrf.mxu0
      %v1582 = vadd.f32 %v1433, %v1581
      %v1583 = vpop.f32.mrf.mxu0
      %v1584 = vadd.f32 %v1435, %v1583
      %1585 = vmatprep.mubr.f32.mxu0 0.0
      %1586 = vmatmul.mubr.f32.gmra.mxu0 %v714
      %v1587 = vpop.f32.mrf.mxu0
      %v1588 = vadd.f32 %v1439, %v1587
      %v1589 = vpop.f32.mrf.mxu0
      %v1590 = vadd.f32 %v1441, %v1589
      %1591 = vmatprep.mubr.f32.mxu0 0.0
      %1592 = vmatmul.mubr.f32.gmra.mxu0 %v717
      %v1593 = vpop.f32.mrf.mxu0
      %v1594 = vadd.f32 %v1445, %v1593
      %v1595 = vpop.f32.mrf.mxu0
      %v1596 = vadd.f32 %v1447, %v1595
      %1597 = vmatprep.mubr.f32.mxu0 0.0
      %1598 = vmatmul.mubr.f32.gmra.mxu0 %v720
      %v1599 = vpop.f32.mrf.mxu0
      %v1600 = vadd.f32 %v1451, %v1599
      %v1601 = vpop.f32.mrf.mxu0
      %v1602 = vadd.f32 %v1453, %v1601
      %1603 = vmatprep.mubr.f32.mxu0 0.0
      %1604 = vmatmul.mubr.f32.gmra.mxu0 %v723
      %v1605 = vpop.f32.mrf.mxu0
      %v1606 = vadd.f32 %v1457, %v1605
      %v1607 = vpop.f32.mrf.mxu0
      %v1608 = vadd.f32 %v1459, %v1607
      %1609 = vmatprep.mubr.f32.mxu0 0.0
      %1610 = vmatmul.mubr.f32.gmra.mxu0 %v726
      %v1611 = vpop.f32.mrf.mxu0
      %v1612 = vadd.f32 %v1463, %v1611
      %v1613 = vpop.f32.mrf.mxu0
      %v1614 = vadd.f32 %v1465, %v1613
      %1615 = vmatprep.mubr.f32.mxu0 0.0
      %1616 = vmatmul.mubr.f32.gmra.mxu0 %v729
      %v1617 = vpop.f32.mrf.mxu0
      %v1618 = vadd.f32 %v1469, %v1617
      %v1619 = vpop.f32.mrf.mxu0
      %v1620 = vadd.f32 %v1471, %v1619
      %1621 = vmatprep.mubr.f32.mxu0 0.0
      %1622 = vmatmul.mubr.f32.gmra.mxu0 %v732
      %v1623 = vpop.f32.mrf.mxu0
      %v1624 = vadd.f32 %v1475, %v1623
      %v1625 = vpop.f32.mrf.mxu0
      %v1626 = vadd.f32 %v1477, %v1625
      %1627 = vdwg.mxu0
      %vm1628 = vcmask 556032
      %v1629 = vsel %vm1628, %v1548, 0.0
      %v1630 = vadd.f32 %v1546, %v1629
      %1631 = vadd.xlane.f32.xlu0 %v1630
      %v1632 = vpop.xlane.xlu0 %1631
      %v1633 = vsel %vm1628, %v1554, 0.0
      %v1634 = vadd.f32 %v1552, %v1633
      %1635 = vadd.xlane.f32.xlu0 %v1634
      %v1636 = vpop.xlane.xlu0 %1635
      %v1637 = vsel %vm1628, %v1560, 0.0
      %v1638 = vadd.f32 %v1558, %v1637
      %1639 = vadd.xlane.f32.xlu0 %v1638
      %v1640 = vpop.xlane.xlu0 %1639
      %v1641 = vsel %vm1628, %v1566, 0.0
      %v1642 = vadd.f32 %v1564, %v1641
      %1643 = vadd.xlane.f32.xlu0 %v1642
      %v1644 = vpop.xlane.xlu0 %1643
      %v1645 = vsel %vm1628, %v1572, 0.0
      %v1646 = vadd.f32 %v1570, %v1645
      %1647 = vadd.xlane.f32.xlu0 %v1646
      %v1648 = vpop.xlane.xlu0 %1647
      %v1649 = vsel %vm1628, %v1578, 0.0
      %v1650 = vadd.f32 %v1576, %v1649
      %1651 = vadd.xlane.f32.xlu0 %v1650
      %v1652 = vpop.xlane.xlu0 %1651
      %v1653 = vsel %vm1628, %v1584, 0.0
      %v1654 = vadd.f32 %v1582, %v1653
      %1655 = vadd.xlane.f32.xlu0 %v1654
      %v1656 = vpop.xlane.xlu0 %1655
      %v1657 = vsel %vm1628, %v1590, 0.0
      %v1658 = vadd.f32 %v1588, %v1657
      %1659 = vadd.xlane.f32.xlu0 %v1658
      %v1660 = vpop.xlane.xlu0 %1659
      %v1661 = vsel %vm1628, %v1596, 0.0
      %v1662 = vadd.f32 %v1594, %v1661
      %1663 = vadd.xlane.f32.xlu0 %v1662
      %v1664 = vpop.xlane.xlu0 %1663
      %v1665 = vsel %vm1628, %v1602, 0.0
      %v1666 = vadd.f32 %v1600, %v1665
      %1667 = vadd.xlane.f32.xlu0 %v1666
      %v1668 = vpop.xlane.xlu0 %1667
      %v1669 = vsel %vm1628, %v1608, 0.0
      %v1670 = vadd.f32 %v1606, %v1669
      %1671 = vadd.xlane.f32.xlu0 %v1670
      %v1672 = vpop.xlane.xlu0 %1671
      %v1673 = vsel %vm1628, %v1614, 0.0
      %v1674 = vadd.f32 %v1612, %v1673
      %1675 = vadd.xlane.f32.xlu0 %v1674
      %v1676 = vpop.xlane.xlu0 %1675
      %v1677 = vsel %vm1628, %v1620, 0.0
      %v1678 = vadd.f32 %v1618, %v1677
      %1679 = vadd.xlane.f32.xlu0 %v1678
      %v1680 = vpop.xlane.xlu0 %1679
      %v1681 = vsel %vm1628, %v1626, 0.0
      %v1682 = vadd.f32 %v1624, %v1681
      %1683 = vadd.xlane.f32.xlu0 %v1682
      %v1684 = vpop.xlane.xlu0 %1683
      %v1685 = vmul.f32 %v1632, 0.0051020407
      %v1686 = vmul.f32 %v1636, 0.0051020407
      %v1687 = vmul.f32 %v1640, 0.0051020407
      %v1688 = vmul.f32 %v1644, 0.0051020407
      %v1689 = vmul.f32 %v1648, 0.0051020407
      %v1690 = vmul.f32 %v1652, 0.0051020407
      %v1691 = vmul.f32 %v1656, 0.0051020407
      %v1692 = vmul.f32 %v1660, 0.0051020407
      %v1693 = vmul.f32 %v1664, 0.0051020407
      %v1694 = vmul.f32 %v1668, 0.0051020407
      %v1695 = vmul.f32 %v1672, 0.0051020407
      %v1696 = vmul.f32 %v1676, 0.0051020407
      %v1697 = vmul.f32 %v1680, 0.0051020407
      %v1698 = vmul.f32 %v1684, 0.0051020407
      %v1699 = vsub.f32 %v1546, %v1685
      %v1700 = vsub.f32 %v1548, %v1685
      %v1701 = vsub.f32 %v1552, %v1686
      %v1702 = vsub.f32 %v1554, %v1686
      %v1703 = vsub.f32 %v1558, %v1687
      %v1704 = vsub.f32 %v1560, %v1687
      %v1705 = vsub.f32 %v1564, %v1688
      %v1706 = vsub.f32 %v1566, %v1688
      %v1707 = vsub.f32 %v1570, %v1689
      %v1708 = vsub.f32 %v1572, %v1689
      %v1709 = vsub.f32 %v1576, %v1690
      %v1710 = vsub.f32 %v1578, %v1690
      %v1711 = vsub.f32 %v1582, %v1691
      %v1712 = vsub.f32 %v1584, %v1691
      %v1713 = vsub.f32 %v1588, %v1692
      %v1714 = vsub.f32 %v1590, %v1692
      %v1715 = vsub.f32 %v1594, %v1693
      %v1716 = vsub.f32 %v1596, %v1693
      %v1717 = vsub.f32 %v1600, %v1694
      %v1718 = vsub.f32 %v1602, %v1694
      %v1719 = vsub.f32 %v1606, %v1695
      %v1720 = vsub.f32 %v1608, %v1695
      %v1721 = vsub.f32 %v1612, %v1696
      %v1722 = vsub.f32 %v1614, %v1696
      %v1723 = vsub.f32 %v1618, %v1697
      %v1724 = vsub.f32 %v1620, %v1697
      %v1725 = vsub.f32 %v1624, %v1698
      %v1726 = vsub.f32 %v1626, %v1698
      %v1727 = vmul.f32 %v1699, %v1699
      %v1728 = vmul.f32 %v1700, %v1700
      %v1729 = vmul.f32 %v1701, %v1701
      %v1730 = vmul.f32 %v1702, %v1702
      %v1731 = vmul.f32 %v1703, %v1703
      %v1732 = vmul.f32 %v1704, %v1704
      %v1733 = vmul.f32 %v1705, %v1705
      %v1734 = vmul.f32 %v1706, %v1706
      %v1735 = vmul.f32 %v1707, %v1707
      %v1736 = vmul.f32 %v1708, %v1708
      %v1737 = vmul.f32 %v1709, %v1709
      %v1738 = vmul.f32 %v1710, %v1710
      %v1739 = vmul.f32 %v1711, %v1711
      %v1740 = vmul.f32 %v1712, %v1712
      %v1741 = vmul.f32 %v1713, %v1713
      %v1742 = vmul.f32 %v1714, %v1714
      %v1743 = vmul.f32 %v1715, %v1715
      %v1744 = vmul.f32 %v1716, %v1716
      %v1745 = vmul.f32 %v1717, %v1717
      %v1746 = vmul.f32 %v1718, %v1718
      %v1747 = vmul.f32 %v1719, %v1719
      %v1748 = vmul.f32 %v1720, %v1720
      %v1749 = vmul.f32 %v1721, %v1721
      %v1750 = vmul.f32 %v1722, %v1722
      %v1751 = vmul.f32 %v1723, %v1723
      %v1752 = vmul.f32 %v1724, %v1724
      %v1753 = vmul.f32 %v1725, %v1725
      %v1754 = vmul.f32 %v1726, %v1726
      %v1755 = vsel %vm1628, %v1728, 0.0
      %v1756 = vadd.f32 %v1727, %v1755
      %1757 = vadd.xlane.f32.xlu0 %v1756
      %v1758 = vpop.xlane.xlu0 %1757
      %v1759 = vsel %vm1628, %v1730, 0.0
      %v1760 = vadd.f32 %v1729, %v1759
      %1761 = vadd.xlane.f32.xlu0 %v1760
      %v1762 = vpop.xlane.xlu0 %1761
      %v1763 = vsel %vm1628, %v1732, 0.0
      %v1764 = vadd.f32 %v1731, %v1763
      %1765 = vadd.xlane.f32.xlu0 %v1764
      %v1766 = vpop.xlane.xlu0 %1765
      %v1767 = vsel %vm1628, %v1734, 0.0
      %v1768 = vadd.f32 %v1733, %v1767
      %1769 = vadd.xlane.f32.xlu0 %v1768
      %v1770 = vpop.xlane.xlu0 %1769
      %v1771 = vsel %vm1628, %v1736, 0.0
      %v1772 = vadd.f32 %v1735, %v1771
      %1773 = vadd.xlane.f32.xlu0 %v1772
      %v1774 = vpop.xlane.xlu0 %1773
      %v1775 = vsel %vm1628, %v1738, 0.0
      %v1776 = vadd.f32 %v1737, %v1775
      %1777 = vadd.xlane.f32.xlu0 %v1776
      %v1778 = vpop.xlane.xlu0 %1777
      %v1779 = vsel %vm1628, %v1740, 0.0
      %v1780 = vadd.f32 %v1739, %v1779
      %1781 = vadd.xlane.f32.xlu0 %v1780
      %v1782 = vpop.xlane.xlu0 %1781
      %v1783 = vsel %vm1628, %v1742, 0.0
      %v1784 = vadd.f32 %v1741, %v1783
      %1785 = vadd.xlane.f32.xlu0 %v1784
      %v1786 = vpop.xlane.xlu0 %1785
      %v1787 = vsel %vm1628, %v1744, 0.0
      %v1788 = vadd.f32 %v1743, %v1787
      %1789 = vadd.xlane.f32.xlu0 %v1788
      %v1790 = vpop.xlane.xlu0 %1789
      %v1791 = vsel %vm1628, %v1746, 0.0
      %v1792 = vadd.f32 %v1745, %v1791
      %1793 = vadd.xlane.f32.xlu0 %v1792
      %v1794 = vpop.xlane.xlu0 %1793
      %v1795 = vsel %vm1628, %v1748, 0.0
      %v1796 = vadd.f32 %v1747, %v1795
      %1797 = vadd.xlane.f32.xlu0 %v1796
      %v1798 = vpop.xlane.xlu0 %1797
      %v1799 = vsel %vm1628, %v1750, 0.0
      %v1800 = vadd.f32 %v1749, %v1799
      %1801 = vadd.xlane.f32.xlu0 %v1800
      %v1802 = vpop.xlane.xlu0 %1801
      %v1803 = vsel %vm1628, %v1752, 0.0
      %v1804 = vadd.f32 %v1751, %v1803
      %1805 = vadd.xlane.f32.xlu0 %v1804
      %v1806 = vpop.xlane.xlu0 %1805
      %v1807 = vsel %vm1628, %v1754, 0.0
      %v1808 = vadd.f32 %v1753, %v1807
      %1809 = vadd.xlane.f32.xlu0 %v1808
      %v1810 = vpop.xlane.xlu0 %1809
      %v1811 = vmul.f32 %v1758, 0.0051020407
      %v1812 = vmul.f32 %v1762, 0.0051020407
      %v1813 = vmul.f32 %v1766, 0.0051020407
      %v1814 = vmul.f32 %v1770, 0.0051020407
      %v1815 = vmul.f32 %v1774, 0.0051020407
      %v1816 = vmul.f32 %v1778, 0.0051020407
      %v1817 = vmul.f32 %v1782, 0.0051020407
      %v1818 = vmul.f32 %v1786, 0.0051020407
      %v1819 = vmul.f32 %v1790, 0.0051020407
      %v1820 = vmul.f32 %v1794, 0.0051020407
      %v1821 = vmul.f32 %v1798, 0.0051020407
      %v1822 = vmul.f32 %v1802, 0.0051020407
      %v1823 = vmul.f32 %v1806, 0.0051020407
      %v1824 = vmul.f32 %v1810, 0.0051020407
      %v1825 = vadd.f32 %v1811, 0.001
      %v1826 = vadd.f32 %v1812, 0.001
      %v1827 = vadd.f32 %v1813, 0.001
      %v1828 = vadd.f32 %v1814, 0.001
      %v1829 = vadd.f32 %v1815, 0.001
      %v1830 = vadd.f32 %v1816, 0.001
      %v1831 = vadd.f32 %v1817, 0.001
      %v1832 = vadd.f32 %v1818, 0.001
      %v1833 = vadd.f32 %v1819, 0.001
      %v1834 = vadd.f32 %v1820, 0.001
      %v1835 = vadd.f32 %v1821, 0.001
      %v1836 = vadd.f32 %v1822, 0.001
      %v1837 = vadd.f32 %v1823, 0.001
      %v1838 = vadd.f32 %v1824, 0.001
      %v1839 = vrsqrt.pop %v1825
      %v1840 = vrsqrt.pop %v1826
      %v1841 = vrsqrt.pop %v1827
      %v1842 = vrsqrt.pop %v1828
      %v1843 = vrsqrt.pop %v1829
      %v1844 = vrsqrt.pop %v1830
      %v1845 = vrsqrt.pop %v1831
      %v1846 = vrsqrt.pop %v1832
      %v1847 = vrsqrt.pop %v1833
      %v1848 = vrsqrt.pop %v1834
      %v1849 = vrsqrt.pop %v1835
      %v1850 = vrsqrt.pop %v1836
      %v1851 = vrsqrt.pop %v1837
      %v1852 = vrsqrt.pop %v1838
      %v1853 = vld [vmem:[%s192] sm:$0xff]
      %v1854 = vld [vmem:[%s192 + $0x8] sm:$0xff]
      %v1855 = vld [vmem:[%s192 + $0x10] sm:$0xff]
      %v1856 = vld [vmem:[%s192 + $0x18] sm:$0xff]
      %v1857 = vld [vmem:[%s192 + $0x20] sm:$0xff]
      %v1858 = vld [vmem:[%s192 + $0x28] sm:$0xff]
      %v1859 = vld [vmem:[%s192 + $0x30] sm:$0xff]
      %v1860 = vld [vmem:[%s192 + $0x38] sm:$0xff]
      %v1861 = vld [vmem:[%s192 + $0x40] sm:$0xff]
      %v1862 = vld [vmem:[%s192 + $0x48] sm:$0xff]
      %v1863 = vld [vmem:[%s192 + $0x50] sm:$0xff]
      %v1864 = vld [vmem:[%s192 + $0x58] sm:$0xff]
      %v1865 = vld [vmem:[%s192 + $0x60] sm:$0xff]
      %v1866 = vld [vmem:[%s192 + $0x68] sm:$0xff]
      %v1867 = vmul.f32 %v1839, %v1853
      %v1868 = vmul.f32 %v1840, %v1854
      %v1869 = vmul.f32 %v1841, %v1855
      %v1870 = vmul.f32 %v1842, %v1856
      %v1871 = vmul.f32 %v1843, %v1857
      %v1872 = vmul.f32 %v1844, %v1858
      %v1873 = vmul.f32 %v1845, %v1859
      %v1874 = vmul.f32 %v1846, %v1860
      %v1875 = vmul.f32 %v1847, %v1861
      %v1876 = vmul.f32 %v1848, %v1862
      %v1877 = vmul.f32 %v1849, %v1863
      %v1878 = vmul.f32 %v1850, %v1864
      %v1879 = vmul.f32 %v1851, %v1865
      %v1880 = vmul.f32 %v1852, %v1866
      %1882 = vset.pattern.permute.xlu0 0
      %1883 = vperm.xlu0 %1882, %v1867
      %v1884 = vpop.permute.xlu0 %1883
      %1887 = vset.pattern.permute.xlu0 0
      %1888 = vperm.xlu0 %1887, %v1868
      %v1889 = vpop.permute.xlu0 %1888
      %1892 = vset.pattern.permute.xlu0 0
      %1893 = vperm.xlu0 %1892, %v1869
      %v1894 = vpop.permute.xlu0 %1893
      %1897 = vset.pattern.permute.xlu0 0
      %1898 = vperm.xlu0 %1897, %v1870
      %v1899 = vpop.permute.xlu0 %1898
      %1902 = vset.pattern.permute.xlu0 0
      %1903 = vperm.xlu0 %1902, %v1871
      %v1904 = vpop.permute.xlu0 %1903
      %1907 = vset.pattern.permute.xlu0 0
      %1908 = vperm.xlu0 %1907, %v1872
      %v1909 = vpop.permute.xlu0 %1908
      %1912 = vset.pattern.permute.xlu0 0
      %1913 = vperm.xlu0 %1912, %v1873
      %v1914 = vpop.permute.xlu0 %1913
      %1917 = vset.pattern.permute.xlu0 0
      %1918 = vperm.xlu0 %1917, %v1874
      %v1919 = vpop.permute.xlu0 %1918
      %1922 = vset.pattern.permute.xlu0 0
      %1923 = vperm.xlu0 %1922, %v1875
      %v1924 = vpop.permute.xlu0 %1923
      %1927 = vset.pattern.permute.xlu0 0
      %1928 = vperm.xlu0 %1927, %v1876
      %v1929 = vpop.permute.xlu0 %1928
      %1932 = vset.pattern.permute.xlu0 0
      %1933 = vperm.xlu0 %1932, %v1877
      %v1934 = vpop.permute.xlu0 %1933
      %1937 = vset.pattern.permute.xlu0 0
      %1938 = vperm.xlu0 %1937, %v1878
      %v1939 = vpop.permute.xlu0 %1938
      %1942 = vset.pattern.permute.xlu0 0
      %1943 = vperm.xlu0 %1942, %v1879
      %v1944 = vpop.permute.xlu0 %1943
      %1947 = vset.pattern.permute.xlu0 0
      %1948 = vperm.xlu0 %1947, %v1880
      %v1949 = vpop.permute.xlu0 %1948
      %v1951 = vmul.f32 %v1699, %v1884
      %v1952 = vmul.f32 %v1700, %v1884
      %v1953 = vmul.f32 %v1701, %v1889
      %v1954 = vmul.f32 %v1702, %v1889
      %v1955 = vmul.f32 %v1703, %v1894
      %v1956 = vmul.f32 %v1704, %v1894
      %v1957 = vmul.f32 %v1705, %v1899
      %v1958 = vmul.f32 %v1706, %v1899
      %v1959 = vmul.f32 %v1707, %v1904
      %v1960 = vmul.f32 %v1708, %v1904
      %v1961 = vmul.f32 %v1709, %v1909
      %v1962 = vmul.f32 %v1710, %v1909
      %v1963 = vmul.f32 %v1711, %v1914
      %v1964 = vmul.f32 %v1712, %v1914
      %v1965 = vmul.f32 %v1713, %v1919
      %v1966 = vmul.f32 %v1714, %v1919
      %v1967 = vmul.f32 %v1715, %v1924
      %v1968 = vmul.f32 %v1716, %v1924
      %v1969 = vmul.f32 %v1717, %v1929
      %v1970 = vmul.f32 %v1718, %v1929
      %v1971 = vmul.f32 %v1719, %v1934
      %v1972 = vmul.f32 %v1720, %v1934
      %v1973 = vmul.f32 %v1721, %v1939
      %v1974 = vmul.f32 %v1722, %v1939
      %v1975 = vmul.f32 %v1723, %v1944
      %v1976 = vmul.f32 %v1724, %v1944
      %v1977 = vmul.f32 %v1725, %v1949
      %v1978 = vmul.f32 %v1726, %v1949
      %1980 = vset.pattern.permute.xlu0 1
      %1981 = vperm.xlu0 %1980, %v1853
      %v1982 = vpop.permute.xlu0 %1981
      %1985 = vset.pattern.permute.xlu0 1
      %1986 = vperm.xlu0 %1985, %v1854
      %v1987 = vpop.permute.xlu0 %1986
      %1990 = vset.pattern.permute.xlu0 1
      %1991 = vperm.xlu0 %1990, %v1855
      %v1992 = vpop.permute.xlu0 %1991
      %1995 = vset.pattern.permute.xlu0 1
      %1996 = vperm.xlu0 %1995, %v1856
      %v1997 = vpop.permute.xlu0 %1996
      %2000 = vset.pattern.permute.xlu0 1
      %2001 = vperm.xlu0 %2000, %v1857
      %v2002 = vpop.permute.xlu0 %2001
      %2005 = vset.pattern.permute.xlu0 1
      %2006 = vperm.xlu0 %2005, %v1858
      %v2007 = vpop.permute.xlu0 %2006
      %2010 = vset.pattern.permute.xlu0 1
      %2011 = vperm.xlu0 %2010, %v1859
      %v2012 = vpop.permute.xlu0 %2011
      %2015 = vset.pattern.permute.xlu0 1
      %2016 = vperm.xlu0 %2015, %v1860
      %v2017 = vpop.permute.xlu0 %2016
      %2020 = vset.pattern.permute.xlu0 1
      %2021 = vperm.xlu0 %2020, %v1861
      %v2022 = vpop.permute.xlu0 %2021
      %2025 = vset.pattern.permute.xlu0 1
      %2026 = vperm.xlu0 %2025, %v1862
      %v2027 = vpop.permute.xlu0 %2026
      %2030 = vset.pattern.permute.xlu0 1
      %2031 = vperm.xlu0 %2030, %v1863
      %v2032 = vpop.permute.xlu0 %2031
      %2035 = vset.pattern.permute.xlu0 1
      %2036 = vperm.xlu0 %2035, %v1864
      %v2037 = vpop.permute.xlu0 %2036
      %2040 = vset.pattern.permute.xlu0 1
      %2041 = vperm.xlu0 %2040, %v1865
      %v2042 = vpop.permute.xlu0 %2041
      %2045 = vset.pattern.permute.xlu0 1
      %2046 = vperm.xlu0 %2045, %v1866
      %v2047 = vpop.permute.xlu0 %2046
      %v2049 = vadd.f32 %v1951, %v1982
      %v2050 = vadd.f32 %v1952, %v1982
      %v2051 = vadd.f32 %v1953, %v1987
      %v2052 = vadd.f32 %v1954, %v1987
      %v2053 = vadd.f32 %v1955, %v1992
      %v2054 = vadd.f32 %v1956, %v1992
      %v2055 = vadd.f32 %v1957, %v1997
      %v2056 = vadd.f32 %v1958, %v1997
      %v2057 = vadd.f32 %v1959, %v2002
      %v2058 = vadd.f32 %v1960, %v2002
      %v2059 = vadd.f32 %v1961, %v2007
      %v2060 = vadd.f32 %v1962, %v2007
      %v2061 = vadd.f32 %v1963, %v2012
      %v2062 = vadd.f32 %v1964, %v2012
      %v2063 = vadd.f32 %v1965, %v2017
      %v2064 = vadd.f32 %v1966, %v2017
      %v2065 = vadd.f32 %v1967, %v2022
      %v2066 = vadd.f32 %v1968, %v2022
      %v2067 = vadd.f32 %v1969, %v2027
      %v2068 = vadd.f32 %v1970, %v2027
      %v2069 = vadd.f32 %v1971, %v2032
      %v2070 = vadd.f32 %v1972, %v2032
      %v2071 = vadd.f32 %v1973, %v2037
      %v2072 = vadd.f32 %v1974, %v2037
      %v2073 = vadd.f32 %v1975, %v2042
      %v2074 = vadd.f32 %v1976, %v2042
      %v2075 = vadd.f32 %v1977, %v2047
      %v2076 = vadd.f32 %v1978, %v2047
      %2077 = vst [vmem:[%s199] sm:$0xff] %v2049
      %2078 = vst.msk [vmem:[%s199 + $0x8] sm:$0xff] %vm1628, %v2050
      %2079 = vst [vmem:[%s199 + $0x10] sm:$0xff] %v2051
      %2080 = vst.msk [vmem:[%s199 + $0x18] sm:$0xff] %vm1628, %v2052
      %2081 = vst [vmem:[%s199 + $0x20] sm:$0xff] %v2053
      %2082 = vst.msk [vmem:[%s199 + $0x28] sm:$0xff] %vm1628, %v2054
      %2083 = vst [vmem:[%s199 + $0x30] sm:$0xff] %v2055
      %2084 = vst.msk [vmem:[%s199 + $0x38] sm:$0xff] %vm1628, %v2056
      %2085 = vst [vmem:[%s199 + $0x40] sm:$0xff] %v2057
      %2086 = vst.msk [vmem:[%s199 + $0x48] sm:$0xff] %vm1628, %v2058
      %2087 = vst [vmem:[%s199 + $0x50] sm:$0xff] %v2059
      %2088 = vst.msk [vmem:[%s199 + $0x58] sm:$0xff] %vm1628, %v2060
      %2089 = vst [vmem:[%s199 + $0x60] sm:$0xff] %v2061
      %2090 = vst.msk [vmem:[%s199 + $0x68] sm:$0xff] %vm1628, %v2062
      %2091 = vst [vmem:[%s199 + $0x70] sm:$0xff] %v2063
      %2092 = vst.msk [vmem:[%s199 + $0x78] sm:$0xff] %vm1628, %v2064
      %2093 = vst [vmem:[%s199 + $0x80] sm:$0xff] %v2065
      %2094 = vst.msk [vmem:[%s199 + $0x88] sm:$0xff] %vm1628, %v2066
      %2095 = vst [vmem:[%s199 + $0x90] sm:$0xff] %v2067
      %2096 = vst.msk [vmem:[%s199 + $0x98] sm:$0xff] %vm1628, %v2068
      %2097 = vst [vmem:[%s199 + $0xa0] sm:$0xff] %v2069
      %2098 = vst.msk [vmem:[%s199 + $0xa8] sm:$0xff] %vm1628, %v2070
      %2099 = vst [vmem:[%s199 + $0xb0] sm:$0xff] %v2071
      %2100 = vst.msk [vmem:[%s199 + $0xb8] sm:$0xff] %vm1628, %v2072
      %2101 = vst [vmem:[%s199 + $0xc0] sm:$0xff] %v2073
      %2102 = vst.msk [vmem:[%s199 + $0xc8] sm:$0xff] %vm1628, %v2074
      %2103 = vst [vmem:[%s199 + $0xd0] sm:$0xff] %v2075
      %2104 = vst.msk [vmem:[%s199 + $0xd8] sm:$0xff] %vm1628, %v2076
      %s2105 = smul.u32 14, %s14
      %p2106 = scmp.lt.s32.totalorder %s2105, 27
      %s2107 = scalar_select %p2106, %s2105, 27
      %s2108 = smul.addr %s2107, 2
      %s2109 = smul.addr %s2108, 8
      %s2110 = scalar_lea.vmem %s3, %s2109
      // Predicated region
      $region33: #{tpu_custom_call.1} parent=31 // pred_check
        %p2111 = pneg %p105
      $region34: #{tpu_custom_call.1} parent=31 // pred_check_branch
        %2113 = sbr.rel (%p2111) target = $region36
      $region35: #{tpu_custom_call.1} parent=31 // pred_region
        %s2114 = smul.u32 14, %s14
      $region36: #{tpu_custom_call.1} parent=31 // pred_fallthru
        _
    $region32: #{tpu_custom_call.1} parent=5 // pred_fallthru
      _
    %p2115 = scmp.le.s32.totalorder 2, %s9
    // Predicated region
    $region37: #{tpu_custom_call.1} parent=5 // pred_check
      %p2116 = pneg %p2115
    $region38: #{tpu_custom_call.1} parent=5 // pred_check_branch
      %2118 = sbr.rel (%p2116) target = $region40
    $region39: #{tpu_custom_call.1} parent=5 // pred_region
      %s2119 = ssub.s32 %s9, 2
      // Predicated region
      $region41: #{tpu_custom_call.1} parent=39 // pred_check
        %p2120 = pneg %p111
      $region42: #{tpu_custom_call.1} parent=39 // pred_check_branch
        %2122 = sbr.rel (%p2120) target = $region44
      $region43: #{tpu_custom_call.1} parent=39 // pred_region
        %s2123 = smul.u32 14, %s15
        %p2124 = scmp.lt.s32.totalorder %s2123, 27
        %s2125 = scalar_select %p2124, %s2123, 27
        %s2126 = smul.addr %s2125, 2
        %s2127 = smul.addr %s2126, 8
        %s2128 = scalar_lea.vmem %s3, %s2127
      $region44: #{tpu_custom_call.1} parent=39 // pred_fallthru
        _
    $region40: #{tpu_custom_call.1} parent=5 // pred_fallthru
      _
  $region6: #{tpu_custom_call.1} parent=0 // loop_footer
    %s13 = sadd.s32 1, %s9
  $region7: #{tpu_custom_call.1} parent=0 // loop_footer_branch
    %8 = sbr.rel target = $region3
  $region8: #{tpu_custom_call.1} parent=0 // loop_exit
    _

</llo_original>
